<compile_context>
chip_gen: v5e
topology: v5e:2x2
jax: 0.10.0
libtpu: 0.0.40
codegen_flags: <defaults>
</compile_context>

<pallas_src>
import math

import numpy as np
import jax
import jax.numpy as jnp
from jax import lax
from jax.experimental import pallas as pl
from jax.experimental.pallas import tpu as pltpu  # noqa: F401  (TPU backend)

# ----------------------------- configuration --------------------------------
B = 2               # batch
IDIM = 16           # mel dim (kept small)
LMAX = 16           # number of frames
CONV_CHANS = (4, 4, 8)
KSIZE = 3
STRIDE = 2
PAD = (KSIZE - 1) // 2
GRU_UNITS = 32
GST_TOKENS = 10
GST_TOKEN_DIM = 32
GST_HEADS = 4
DK = GST_TOKEN_DIM // GST_HEADS


def _conv_out(n):
    return (n - KSIZE + 2 * PAD) // STRIDE + 1


# shapes after the conv stack
_t, _f = LMAX, IDIM
for _ in CONV_CHANS:
    _t, _f = _conv_out(_t), _conv_out(_f)
T2, F2 = _t, _f                      # (2, 2)
GRU_IN = F2 * CONV_CHANS[-1]         # 16


# ----------------------------- fused Pallas kernel ---------------------------
def style_encoder_kernel(
        x_ref,                                    # (B*LMAX, IDIM) stacked channels-last input
        r1_ref, a1_ref, s1_ref,                   # conv layer 1 operators
        r2_ref, a2_ref, s2_ref,                   # conv layer 2 operators
        r3_ref, a3_ref, s3_ref,                   # conv layer 3 operators
        wi_ref, bi_ref, wh_ref, bh_ref,           # GRU (gates fused r|z|n)
        gst_ref, wq_ref, bq_ref, wk_ref, bk_ref,  # style-token attention
        wv_ref, bv_ref, wo_ref, bo_ref,
        out_ref):                                 # (B, GST_TOKEN_DIM)
    f32 = jnp.float32

    # ---------------- reference-encoder conv stack (3 layers) ----------------
    # y = relu( sum_ki (R_ki @ x) @ A_ki + shift ); R/A precomputed on host.
    x = x_ref[...]
    for r_ref, a_ref, s_ref in ((r1_ref, a1_ref, s1_ref),
                                (r2_ref, a2_ref, s2_ref),
                                (r3_ref, a3_ref, s3_ref)):
        acc = None
        for ki in range(KSIZE):
            z = jnp.dot(r_ref[ki], x, preferred_element_type=f32)
            term = jnp.dot(z, a_ref[ki], preferred_element_type=f32)
            acc = term if acc is None else acc + term
        x = jnp.maximum(acc + s_ref[...], 0.0)
    # x: (T2*B, GRU_IN) with rows ordered (t*B + b), features ordered (freq, chan)

    # ---------------- GRU (input projection hoisted, gates fused) ------------
    H = GRU_UNITS
    gi_all = jnp.dot(x, wi_ref[...], preferred_element_type=f32) + bi_ref[...]   # (T2*B, 3H)
    h = jnp.zeros((B, H), f32)
    for t in range(T2):                                    # T2 == 2 -> fully unrolled
        gi = gi_all[t * B:(t + 1) * B, :]
        gh = jnp.dot(h, wh_ref[...], preferred_element_type=f32) + bh_ref[...]
        r = jax.nn.sigmoid(gi[:, 0:H] + gh[:, 0:H])
        zg = jax.nn.sigmoid(gi[:, H:2 * H] + gh[:, H:2 * H])
        n = jnp.tanh(gi[:, 2 * H:3 * H] + r * gh[:, 2 * H:3 * H])
        h = (1.0 - zg) * n + zg * h

    # ---------------- style-token multi-head attention -----------------------
    tok = jnp.tanh(gst_ref[...])                                        # (tokens, DK)
    q = jnp.dot(h, wq_ref[...], preferred_element_type=f32) + bq_ref[...]
    k = jnp.dot(tok, wk_ref[...], preferred_element_type=f32) + bk_ref[...]
    v = jnp.dot(tok, wv_ref[...], preferred_element_type=f32) + bv_ref[...]
    wo = wo_ref[...]
    scale = 1.0 / math.sqrt(GST_TOKEN_DIM)          # == 1/sqrt(d_k * n_head)
    acc = None
    for hd in range(GST_HEADS):
        lo, hi = hd * DK, (hd + 1) * DK
        qh, kh, vh = q[:, lo:hi], k[:, lo:hi], v[:, lo:hi]
        s = lax.dot_general(qh, kh, (((1,), (1,)), ((), ())),
                            preferred_element_type=f32) * scale        # (B, tokens)
        s = s - jnp.max(s, axis=-1, keepdims=True)
        e = jnp.exp(s)
        # exact EUP reciprocal; approx=True is a drop-in but is kept exact so the
        # tightened acceptance tolerance below stays meaningful.
        a = e * pl.reciprocal(jnp.sum(e, axis=-1, keepdims=True))
        oh = jnp.dot(a, vh, preferred_element_type=f32)                 # (B, DK)
        c = jnp.dot(oh, wo[lo:hi, :], preferred_element_type=f32)       # fold into linear_out
        acc = c if acc is None else acc + c
    out_ref[...] = acc + bo_ref[...]


# ----------------------------- host-side weight packing ----------------------
def pack_inputs(params):
    """Fold/reshape the PyTorch-layout parameters into the fused-kernel operands.

    Done ONCE (like weight loading): BN scale folded into conv weights, conv
    stride/pad/shift folded into small selection matrices, GRU gates fused and
    input-weight rows permuted to the kernel's (freq, chan) feature order.
    """
    ins = []
    n_layers = len(params["convs"])
    h_in, w_in = LMAX, IDIM
    for li, (w, scale, shift) in enumerate(params["convs"]):
        w = np.asarray(w, np.float32)
        scale = np.asarray(scale, np.float32)
        shift = np.asarray(shift, np.float32)
        c_out, c_in, k, _ = w.shape
        h_out, w_out = _conv_out(h_in), _conv_out(w_in)
        wf = w * scale[:, None, None, None]          # fold BN scale into conv weight
        last = (li == n_layers - 1)

        # R[ki]: (B*h_out, B*h_in) -- row (time) selection: ki shift + stride-2 +
        # zero padding + per-batch block structure; the last layer also emits
        # time-major rows (t*B+b) so the GRU input needs no in-kernel reorder.
        R = np.zeros((k, B * h_out, B * h_in), np.float32)
        for ki in range(k):
            for b in range(B):
                for i in range(h_out):
                    r = STRIDE * i + ki - PAD
                    if 0 <= r < h_in:
                        orow = i * B + b if last else b * h_out + i
                        R[ki, orow, b * h_in + r] = 1.0

        # A[ki]: (w_in*c_in, w_out*c_out) -- column (freq) operator: kj shift +
        # stride-2 + padding + C_in->C_out channel mixing (channels-last layout).
        A = np.zeros((k, w_in * c_in, w_out * c_out), np.float32)
        for ki in range(k):
            for j in range(w_out):
                for kj in range(k):
                    wc = STRIDE * j + kj - PAD
                    if 0 <= wc < w_in:
                        A[ki, wc * c_in:(wc + 1) * c_in,
                          j * c_out:(j + 1) * c_out] += wf[:, :, ki, kj].T

        sh = np.tile(shift, w_out).reshape(1, w_out * c_out).astype(np.float32)
        ins += [jnp.asarray(R), jnp.asarray(A), jnp.asarray(sh)]
        h_in, w_in = h_out, w_out

    # GRU: permute input-weight rows from PyTorch's (chan, freq) feature order
    # to the kernel's (freq, chan) order, then fuse the r|z|n gates.
    g = params["gru"]
    c_last = CONV_CHANS[-1]
    perm = np.array([(u % c_last) * F2 + u // c_last for u in range(GRU_IN)], np.int32)
    wi = jnp.concatenate([g["w_ir"][perm], g["w_iz"][perm], g["w_in"][perm]], axis=1)
    bi = jnp.concatenate([g["b_ir"], g["b_iz"], g["b_in"]], axis=1)
    wh = jnp.concatenate([g["w_hr"], g["w_hz"], g["w_hn"]], axis=1)
    bh = jnp.concatenate([g["b_hr"], g["b_hz"], g["b_hn"]], axis=1)
    ins += [wi, bi, wh, bh]

    s = params["stl"]
    ins += [s["gst_embs"],
            s["wq"], s["bq"].reshape(1, -1),
            s["wk"], s["bk"].reshape(1, -1),
            s["wv"], s["bv"].reshape(1, -1),
            s["wo"], s["bo"].reshape(1, -1)]
    return tuple(ins)


# ----------------------------- forward wrapper --------------------------------
@jax.jit
def style_encoder_forward(speech, kernel_inputs):
    """speech: (B, idim, Lmax) -> style embeddings (B, gst_token_dim, 1)."""
    # the only host-side glue: channels-last, batch-stacked rows (b*T + t, freq)
    x_cl = jnp.transpose(speech, (0, 2, 1)).reshape(B * LMAX, IDIM)
    style = pl.pallas_call(
        style_encoder_kernel,
        out_shape=jax.ShapeDtypeStruct((B, GST_TOKEN_DIM), jnp.float32),
    )(x_cl, *kernel_inputs)
    return style[:, :, None]                                  # (B, F, 1)


# ----------------------------- reference (pure JAX) ---------------------------
def reference_forward(speech, params):
    x = jnp.transpose(speech, (0, 2, 1))[:, None, :, :]
    for (w, scale, shift) in params["convs"]:
        x = lax.conv_general_dilated(
            x, w, (STRIDE, STRIDE), [(PAD, PAD), (PAD, PAD)],
            dimension_numbers=("NCHW", "OIHW", "NCHW"))
        x = x * scale[None, :, None, None] + shift[None, :, None, None]
        x = jnp.maximum(x, 0.0)
    Bn, C, Tt, Fd = x.shape
    hs = jnp.transpose(x, (0, 2, 1, 3)).reshape(Bn, Tt, C * Fd)
    g = params["gru"]
    h = jnp.zeros((Bn, GRU_UNITS), jnp.float32)
    for t in range(Tt):
        x_t = hs[:, t, :]
        r = jax.nn.sigmoid(x_t @ g["w_ir"] + g["b_ir"] + h @ g["w_hr"] + g["b_hr"])
        z = jax.nn.sigmoid(x_t @ g["w_iz"] + g["b_iz"] + h @ g["w_hz"] + g["b_hz"])
        n = jnp.tanh(x_t @ g["w_in"] + g["b_in"] + r * (h @ g["w_hn"] + g["b_hn"]))
        h = (1.0 - z) * n + z * h
    s = params["stl"]
    tok = jnp.tanh(s["gst_embs"])
    q = h @ s["wq"] + s["bq"]
    k = tok @ s["wk"] + s["bk"]
    v = tok @ s["wv"] + s["bv"]
    outs = []
    for hd in range(GST_HEADS):
        qh = q[:, hd * DK:(hd + 1) * DK]
        kh = k[:, hd * DK:(hd + 1) * DK]
        vh = v[:, hd * DK:(hd + 1) * DK]
        sc = (qh @ kh.T) / math.sqrt(GST_TOKEN_DIM)
        a = jax.nn.softmax(sc, axis=-1)
        outs.append(a @ vh)
    o = jnp.concatenate(outs, axis=-1)
    style = o @ s["wo"] + s["bo"]
    return style[:, :, None]


# ----------------------------- parameter init ---------------------------------
def init_params(key):
    keys = iter(jax.random.split(key, 64))
    params = {}

    # conv stack (Conv2d bias=False; BatchNorm folded to scale/shift, eval mode)
    convs = []
    in_ch = 1
    for out_ch in CONV_CHANS:
        w = 0.3 * jax.random.normal(next(keys), (out_ch, in_ch, KSIZE, KSIZE), jnp.float32)
        gamma = 1.0 + 0.1 * jax.random.normal(next(keys), (out_ch,), jnp.float32)
        beta = 0.1 * jax.random.normal(next(keys), (out_ch,), jnp.float32)
        run_mean = jnp.zeros((out_ch,), jnp.float32)
        run_var = jnp.ones((out_ch,), jnp.float32)
        scale = gamma / jnp.sqrt(run_var + 1e-5)
        shift = beta - run_mean * scale
        convs.append((w, scale, shift))
        in_ch = out_ch
    params["convs"] = convs

    gru = {}
    for name in ("w_ir", "w_iz", "w_in"):
        gru[name] = 0.2 * jax.random.normal(next(keys), (GRU_IN, GRU_UNITS), jnp.float32)
    for name in ("w_hr", "w_hz", "w_hn"):
        gru[name] = 0.2 * jax.random.normal(next(keys), (GRU_UNITS, GRU_UNITS), jnp.float32)
    for name in ("b_ir", "b_iz", "b_in", "b_hr", "b_hz", "b_hn"):
        gru[name] = 0.1 * jax.random.normal(next(keys), (1, GRU_UNITS), jnp.float32)
    params["gru"] = gru

    stl = {
        "gst_embs": jax.random.normal(next(keys), (GST_TOKENS, DK), jnp.float32),
        "wq": 0.2 * jax.random.normal(next(keys), (GRU_UNITS, GST_TOKEN_DIM), jnp.float32),
        "bq": 0.1 * jax.random.normal(next(keys), (GST_TOKEN_DIM,), jnp.float32),
        "wk": 0.2 * jax.random.normal(next(keys), (DK, GST_TOKEN_DIM), jnp.float32),
        "bk": 0.1 * jax.random.normal(next(keys), (GST_TOKEN_DIM,), jnp.float32),
        "wv": 0.2 * jax.random.normal(next(keys), (DK, GST_TOKEN_DIM), jnp.float32),
        "bv": 0.1 * jax.random.normal(next(keys), (GST_TOKEN_DIM,), jnp.float32),
        "wo": 0.2 * jax.random.normal(next(keys), (GST_TOKEN_DIM, GST_TOKEN_DIM), jnp.float32),
        "bo": 0.1 * jax.random.normal(next(keys), (GST_TOKEN_DIM,), jnp.float32),
    }
    params["stl"] = stl
    return params


# ------------------------------------ main ------------------------------------
if __name__ == "__main__":
    root = jax.random.PRNGKey(0)
    kp, kx = jax.random.split(root)
    params = init_params(kp)
    speech = jax.random.normal(kx, (B, IDIM, LMAX), jnp.float32)

    kernel_inputs = pack_inputs(params)   # host-side, once (like weight loading)

    out = style_encoder_forward(speech, kernel_inputs)
    out = jax.block_until_ready(out)
    assert out.shape == (B, GST_TOKEN_DIM, 1), out.shape

    ref = reference_forward(speech, params)
    err = float(jnp.max(jnp.abs(out - ref)))
    # Tightened from 5e-2 (review): exact-f32 agreement is ~1e-5; 1e-3 leaves
    # headroom for EUP transcendental ulp differences while still catching any
    # layout / gate-ordering / weight-folding regression.
    assert err < 1e-3, f"mismatch vs reference: {err}"

    print("KERNEL_OK")
</pallas_src>

<mosaic_0001>
module attributes {stable_mosaic.version = 11 : i64} {
  func.func @style_encoder_kernel(%arg0: memref<32x16xf32, #tpu.memory_space<vmem>>, %arg1: memref<3x16x32xf32, #tpu.memory_space<vmem>>, %arg2: memref<3x16x32xf32, #tpu.memory_space<vmem>>, %arg3: memref<1x32xf32, #tpu.memory_space<vmem>>, %arg4: memref<3x8x16xf32, #tpu.memory_space<vmem>>, %arg5: memref<3x32x16xf32, #tpu.memory_space<vmem>>, %arg6: memref<1x16xf32, #tpu.memory_space<vmem>>, %arg7: memref<3x4x8xf32, #tpu.memory_space<vmem>>, %arg8: memref<3x16x16xf32, #tpu.memory_space<vmem>>, %arg9: memref<1x16xf32, #tpu.memory_space<vmem>>, %arg10: memref<16x96xf32, #tpu.memory_space<vmem>>, %arg11: memref<1x96xf32, #tpu.memory_space<vmem>>, %arg12: memref<32x96xf32, #tpu.memory_space<vmem>>, %arg13: memref<1x96xf32, #tpu.memory_space<vmem>>, %arg14: memref<10x8xf32, #tpu.memory_space<vmem>>, %arg15: memref<32x32xf32, #tpu.memory_space<vmem>>, %arg16: memref<1x32xf32, #tpu.memory_space<vmem>>, %arg17: memref<8x32xf32, #tpu.memory_space<vmem>>, %arg18: memref<1x32xf32, #tpu.memory_space<vmem>>, %arg19: memref<8x32xf32, #tpu.memory_space<vmem>>, %arg20: memref<1x32xf32, #tpu.memory_space<vmem>>, %arg21: memref<32x32xf32, #tpu.memory_space<vmem>>, %arg22: memref<1x32xf32, #tpu.memory_space<vmem>>, %arg23: memref<2x32xf32, #tpu.memory_space<vmem>>) attributes {dimension_semantics = [], scalar_prefetch = 0 : i64, scratch_operands = 0 : i64, tpu.core_type = #tpu.core_type<tc>} {
    %c0 = arith.constant 0 : index
    %c0_0 = arith.constant 0 : index
    %0 = vector.load %arg0[%c0, %c0_0] : memref<32x16xf32, #tpu.memory_space<vmem>>, vector<32x16xf32>
    %c0_1 = arith.constant 0 : index
    %c0_2 = arith.constant 0 : index
    %c0_3 = arith.constant 0 : index
    %1 = vector.load %arg1[%c0_1, %c0_2, %c0_3] : memref<3x16x32xf32, #tpu.memory_space<vmem>>, vector<1x16x32xf32>
    %2 = vector.shape_cast %1 : vector<1x16x32xf32> to vector<16x32xf32>
    %cst = arith.constant dense<0.000000e+00> : vector<16x16xf32>
    %3 = tpu.matmul %2, %0, %cst {dimension_numbers = #tpu.dot_dimension_numbers<[1], [0], [0], [1], [0, 0, 1, 1], [], []>} : vector<16x32xf32>, vector<32x16xf32>, vector<16x16xf32> -> vector<16x16xf32>
    %c0_4 = arith.constant 0 : index
    %c0_5 = arith.constant 0 : index
    %c0_6 = arith.constant 0 : index
    %4 = vector.load %arg2[%c0_4, %c0_5, %c0_6] : memref<3x16x32xf32, #tpu.memory_space<vmem>>, vector<1x16x32xf32>
    %5 = vector.shape_cast %4 : vector<1x16x32xf32> to vector<16x32xf32>
    %cst_7 = arith.constant dense<0.000000e+00> : vector<16x32xf32>
    %6 = tpu.matmul %3, %5, %cst_7 {dimension_numbers = #tpu.dot_dimension_numbers<[1], [0], [0], [1], [0, 0, 1, 1], [], []>} : vector<16x16xf32>, vector<16x32xf32>, vector<16x32xf32> -> vector<16x32xf32>
    %c1 = arith.constant 1 : index
    %c0_8 = arith.constant 0 : index
    %c0_9 = arith.constant 0 : index
    %7 = vector.load %arg1[%c1, %c0_8, %c0_9] : memref<3x16x32xf32, #tpu.memory_space<vmem>>, vector<1x16x32xf32>
    %8 = vector.shape_cast %7 : vector<1x16x32xf32> to vector<16x32xf32>
    %cst_10 = arith.constant dense<0.000000e+00> : vector<16x16xf32>
    %9 = tpu.matmul %8, %0, %cst_10 {dimension_numbers = #tpu.dot_dimension_numbers<[1], [0], [0], [1], [0, 0, 1, 1], [], []>} : vector<16x32xf32>, vector<32x16xf32>, vector<16x16xf32> -> vector<16x16xf32>
    %c1_11 = arith.constant 1 : index
    %c0_12 = arith.constant 0 : index
    %c0_13 = arith.constant 0 : index
    %10 = vector.load %arg2[%c1_11, %c0_12, %c0_13] : memref<3x16x32xf32, #tpu.memory_space<vmem>>, vector<1x16x32xf32>
    %11 = vector.shape_cast %10 : vector<1x16x32xf32> to vector<16x32xf32>
    %cst_14 = arith.constant dense<0.000000e+00> : vector<16x32xf32>
    %12 = tpu.matmul %9, %11, %cst_14 {dimension_numbers = #tpu.dot_dimension_numbers<[1], [0], [0], [1], [0, 0, 1, 1], [], []>} : vector<16x16xf32>, vector<16x32xf32>, vector<16x32xf32> -> vector<16x32xf32>
    %13 = arith.addf %6, %12 : vector<16x32xf32>
    %c2 = arith.constant 2 : index
    %c0_15 = arith.constant 0 : index
    %c0_16 = arith.constant 0 : index
    %14 = vector.load %arg1[%c2, %c0_15, %c0_16] : memref<3x16x32xf32, #tpu.memory_space<vmem>>, vector<1x16x32xf32>
    %15 = vector.shape_cast %14 : vector<1x16x32xf32> to vector<16x32xf32>
    %cst_17 = arith.constant dense<0.000000e+00> : vector<16x16xf32>
    %16 = tpu.matmul %15, %0, %cst_17 {dimension_numbers = #tpu.dot_dimension_numbers<[1], [0], [0], [1], [0, 0, 1, 1], [], []>} : vector<16x32xf32>, vector<32x16xf32>, vector<16x16xf32> -> vector<16x16xf32>
    %c2_18 = arith.constant 2 : index
    %c0_19 = arith.constant 0 : index
    %c0_20 = arith.constant 0 : index
    %17 = vector.load %arg2[%c2_18, %c0_19, %c0_20] : memref<3x16x32xf32, #tpu.memory_space<vmem>>, vector<1x16x32xf32>
    %18 = vector.shape_cast %17 : vector<1x16x32xf32> to vector<16x32xf32>
    %cst_21 = arith.constant dense<0.000000e+00> : vector<16x32xf32>
    %19 = tpu.matmul %16, %18, %cst_21 {dimension_numbers = #tpu.dot_dimension_numbers<[1], [0], [0], [1], [0, 0, 1, 1], [], []>} : vector<16x16xf32>, vector<16x32xf32>, vector<16x32xf32> -> vector<16x32xf32>
    %20 = arith.addf %13, %19 : vector<16x32xf32>
    %c0_22 = arith.constant 0 : index
    %c0_23 = arith.constant 0 : index
    %21 = vector.load %arg3[%c0_22, %c0_23] : memref<1x32xf32, #tpu.memory_space<vmem>>, vector<1x32xf32>
    %22 = vector.broadcast %21 : vector<1x32xf32> to vector<16x32xf32>
    %23 = arith.addf %20, %22 : vector<16x32xf32>
    %cst_24 = arith.constant 0.000000e+00 : f32
    %24 = vector.broadcast %cst_24 : f32 to vector<16x32xf32>
    %25 = arith.maximumf %23, %24 : vector<16x32xf32>
    %c0_25 = arith.constant 0 : index
    %c0_26 = arith.constant 0 : index
    %c0_27 = arith.constant 0 : index
    %26 = vector.load %arg4[%c0_25, %c0_26, %c0_27] : memref<3x8x16xf32, #tpu.memory_space<vmem>>, vector<1x8x16xf32>
    %27 = vector.shape_cast %26 : vector<1x8x16xf32> to vector<8x16xf32>
    %cst_28 = arith.constant dense<0.000000e+00> : vector<8x32xf32>
    %28 = tpu.matmul %27, %25, %cst_28 {dimension_numbers = #tpu.dot_dimension_numbers<[1], [0], [0], [1], [0, 0, 1, 1], [], []>} : vector<8x16xf32>, vector<16x32xf32>, vector<8x32xf32> -> vector<8x32xf32>
    %c0_29 = arith.constant 0 : index
    %c0_30 = arith.constant 0 : index
    %c0_31 = arith.constant 0 : index
    %29 = vector.load %arg5[%c0_29, %c0_30, %c0_31] : memref<3x32x16xf32, #tpu.memory_space<vmem>>, vector<1x32x16xf32>
    %30 = vector.shape_cast %29 : vector<1x32x16xf32> to vector<32x16xf32>
    %cst_32 = arith.constant dense<0.000000e+00> : vector<8x16xf32>
    %31 = tpu.matmul %28, %30, %cst_32 {dimension_numbers = #tpu.dot_dimension_numbers<[1], [0], [0], [1], [0, 0, 1, 1], [], []>} : vector<8x32xf32>, vector<32x16xf32>, vector<8x16xf32> -> vector<8x16xf32>
    %c1_33 = arith.constant 1 : index
    %c0_34 = arith.constant 0 : index
    %c0_35 = arith.constant 0 : index
    %32 = vector.load %arg4[%c1_33, %c0_34, %c0_35] : memref<3x8x16xf32, #tpu.memory_space<vmem>>, vector<1x8x16xf32>
    %33 = vector.shape_cast %32 : vector<1x8x16xf32> to vector<8x16xf32>
    %cst_36 = arith.constant dense<0.000000e+00> : vector<8x32xf32>
    %34 = tpu.matmul %33, %25, %cst_36 {dimension_numbers = #tpu.dot_dimension_numbers<[1], [0], [0], [1], [0, 0, 1, 1], [], []>} : vector<8x16xf32>, vector<16x32xf32>, vector<8x32xf32> -> vector<8x32xf32>
    %c1_37 = arith.constant 1 : index
    %c0_38 = arith.constant 0 : index
    %c0_39 = arith.constant 0 : index
    %35 = vector.load %arg5[%c1_37, %c0_38, %c0_39] : memref<3x32x16xf32, #tpu.memory_space<vmem>>, vector<1x32x16xf32>
    %36 = vector.shape_cast %35 : vector<1x32x16xf32> to vector<32x16xf32>
    %cst_40 = arith.constant dense<0.000000e+00> : vector<8x16xf32>
    %37 = tpu.matmul %34, %36, %cst_40 {dimension_numbers = #tpu.dot_dimension_numbers<[1], [0], [0], [1], [0, 0, 1, 1], [], []>} : vector<8x32xf32>, vector<32x16xf32>, vector<8x16xf32> -> vector<8x16xf32>
    %38 = arith.addf %31, %37 : vector<8x16xf32>
    %c2_41 = arith.constant 2 : index
    %c0_42 = arith.constant 0 : index
    %c0_43 = arith.constant 0 : index
    %39 = vector.load %arg4[%c2_41, %c0_42, %c0_43] : memref<3x8x16xf32, #tpu.memory_space<vmem>>, vector<1x8x16xf32>
    %40 = vector.shape_cast %39 : vector<1x8x16xf32> to vector<8x16xf32>
    %cst_44 = arith.constant dense<0.000000e+00> : vector<8x32xf32>
    %41 = tpu.matmul %40, %25, %cst_44 {dimension_numbers = #tpu.dot_dimension_numbers<[1], [0], [0], [1], [0, 0, 1, 1], [], []>} : vector<8x16xf32>, vector<16x32xf32>, vector<8x32xf32> -> vector<8x32xf32>
    %c2_45 = arith.constant 2 : index
    %c0_46 = arith.constant 0 : index
    %c0_47 = arith.constant 0 : index
    %42 = vector.load %arg5[%c2_45, %c0_46, %c0_47] : memref<3x32x16xf32, #tpu.memory_space<vmem>>, vector<1x32x16xf32>
    %43 = vector.shape_cast %42 : vector<1x32x16xf32> to vector<32x16xf32>
    %cst_48 = arith.constant dense<0.000000e+00> : vector<8x16xf32>
    %44 = tpu.matmul %41, %43, %cst_48 {dimension_numbers = #tpu.dot_dimension_numbers<[1], [0], [0], [1], [0, 0, 1, 1], [], []>} : vector<8x32xf32>, vector<32x16xf32>, vector<8x16xf32> -> vector<8x16xf32>
    %45 = arith.addf %38, %44 : vector<8x16xf32>
    %c0_49 = arith.constant 0 : index
    %c0_50 = arith.constant 0 : index
    %46 = vector.load %arg6[%c0_49, %c0_50] : memref<1x16xf32, #tpu.memory_space<vmem>>, vector<1x16xf32>
    %47 = vector.broadcast %46 : vector<1x16xf32> to vector<8x16xf32>
    %48 = arith.addf %45, %47 : vector<8x16xf32>
    %cst_51 = arith.constant 0.000000e+00 : f32
    %49 = vector.broadcast %cst_51 : f32 to vector<8x16xf32>
    %50 = arith.maximumf %48, %49 : vector<8x16xf32>
    %c0_52 = arith.constant 0 : index
    %c0_53 = arith.constant 0 : index
    %c0_54 = arith.constant 0 : index
    %51 = vector.load %arg7[%c0_52, %c0_53, %c0_54] : memref<3x4x8xf32, #tpu.memory_space<vmem>>, vector<1x4x8xf32>
    %52 = vector.shape_cast %51 : vector<1x4x8xf32> to vector<4x8xf32>
    %cst_55 = arith.constant dense<0.000000e+00> : vector<4x16xf32>
    %53 = tpu.matmul %52, %50, %cst_55 {dimension_numbers = #tpu.dot_dimension_numbers<[1], [0], [0], [1], [0, 0, 1, 1], [], []>} : vector<4x8xf32>, vector<8x16xf32>, vector<4x16xf32> -> vector<4x16xf32>
    %c0_56 = arith.constant 0 : index
    %c0_57 = arith.constant 0 : index
    %c0_58 = arith.constant 0 : index
    %54 = vector.load %arg8[%c0_56, %c0_57, %c0_58] : memref<3x16x16xf32, #tpu.memory_space<vmem>>, vector<1x16x16xf32>
    %55 = vector.shape_cast %54 : vector<1x16x16xf32> to vector<16x16xf32>
    %cst_59 = arith.constant dense<0.000000e+00> : vector<4x16xf32>
    %56 = tpu.matmul %53, %55, %cst_59 {dimension_numbers = #tpu.dot_dimension_numbers<[1], [0], [0], [1], [0, 0, 1, 1], [], []>} : vector<4x16xf32>, vector<16x16xf32>, vector<4x16xf32> -> vector<4x16xf32>
    %c1_60 = arith.constant 1 : index
    %c0_61 = arith.constant 0 : index
    %c0_62 = arith.constant 0 : index
    %57 = vector.load %arg7[%c1_60, %c0_61, %c0_62] : memref<3x4x8xf32, #tpu.memory_space<vmem>>, vector<1x4x8xf32>
    %58 = vector.shape_cast %57 : vector<1x4x8xf32> to vector<4x8xf32>
    %cst_63 = arith.constant dense<0.000000e+00> : vector<4x16xf32>
    %59 = tpu.matmul %58, %50, %cst_63 {dimension_numbers = #tpu.dot_dimension_numbers<[1], [0], [0], [1], [0, 0, 1, 1], [], []>} : vector<4x8xf32>, vector<8x16xf32>, vector<4x16xf32> -> vector<4x16xf32>
    %c1_64 = arith.constant 1 : index
    %c0_65 = arith.constant 0 : index
    %c0_66 = arith.constant 0 : index
    %60 = vector.load %arg8[%c1_64, %c0_65, %c0_66] : memref<3x16x16xf32, #tpu.memory_space<vmem>>, vector<1x16x16xf32>
    %61 = vector.shape_cast %60 : vector<1x16x16xf32> to vector<16x16xf32>
    %cst_67 = arith.constant dense<0.000000e+00> : vector<4x16xf32>
    %62 = tpu.matmul %59, %61, %cst_67 {dimension_numbers = #tpu.dot_dimension_numbers<[1], [0], [0], [1], [0, 0, 1, 1], [], []>} : vector<4x16xf32>, vector<16x16xf32>, vector<4x16xf32> -> vector<4x16xf32>
    %63 = arith.addf %56, %62 : vector<4x16xf32>
    %c2_68 = arith.constant 2 : index
    %c0_69 = arith.constant 0 : index
    %c0_70 = arith.constant 0 : index
    %64 = vector.load %arg7[%c2_68, %c0_69, %c0_70] : memref<3x4x8xf32, #tpu.memory_space<vmem>>, vector<1x4x8xf32>
    %65 = vector.shape_cast %64 : vector<1x4x8xf32> to vector<4x8xf32>
    %cst_71 = arith.constant dense<0.000000e+00> : vector<4x16xf32>
    %66 = tpu.matmul %65, %50, %cst_71 {dimension_numbers = #tpu.dot_dimension_numbers<[1], [0], [0], [1], [0, 0, 1, 1], [], []>} : vector<4x8xf32>, vector<8x16xf32>, vector<4x16xf32> -> vector<4x16xf32>
    %c2_72 = arith.constant 2 : index
    %c0_73 = arith.constant 0 : index
    %c0_74 = arith.constant 0 : index
    %67 = vector.load %arg8[%c2_72, %c0_73, %c0_74] : memref<3x16x16xf32, #tpu.memory_space<vmem>>, vector<1x16x16xf32>
    %68 = vector.shape_cast %67 : vector<1x16x16xf32> to vector<16x16xf32>
    %cst_75 = arith.constant dense<0.000000e+00> : vector<4x16xf32>
    %69 = tpu.matmul %66, %68, %cst_75 {dimension_numbers = #tpu.dot_dimension_numbers<[1], [0], [0], [1], [0, 0, 1, 1], [], []>} : vector<4x16xf32>, vector<16x16xf32>, vector<4x16xf32> -> vector<4x16xf32>
    %70 = arith.addf %63, %69 : vector<4x16xf32>
    %c0_76 = arith.constant 0 : index
    %c0_77 = arith.constant 0 : index
    %71 = vector.load %arg9[%c0_76, %c0_77] : memref<1x16xf32, #tpu.memory_space<vmem>>, vector<1x16xf32>
    %72 = vector.broadcast %71 : vector<1x16xf32> to vector<4x16xf32>
    %73 = arith.addf %70, %72 : vector<4x16xf32>
    %cst_78 = arith.constant 0.000000e+00 : f32
    %74 = vector.broadcast %cst_78 : f32 to vector<4x16xf32>
    %75 = arith.maximumf %73, %74 : vector<4x16xf32>
    %c0_79 = arith.constant 0 : index
    %c0_80 = arith.constant 0 : index
    %76 = vector.load %arg10[%c0_79, %c0_80] : memref<16x96xf32, #tpu.memory_space<vmem>>, vector<16x96xf32>
    %cst_81 = arith.constant dense<0.000000e+00> : vector<4x96xf32>
    %77 = tpu.matmul %75, %76, %cst_81 {dimension_numbers = #tpu.dot_dimension_numbers<[1], [0], [0], [1], [0, 0, 1, 1], [], []>} : vector<4x16xf32>, vector<16x96xf32>, vector<4x96xf32> -> vector<4x96xf32>
    %c0_82 = arith.constant 0 : index
    %c0_83 = arith.constant 0 : index
    %78 = vector.load %arg11[%c0_82, %c0_83] : memref<1x96xf32, #tpu.memory_space<vmem>>, vector<1x96xf32>
    %79 = vector.broadcast %78 : vector<1x96xf32> to vector<4x96xf32>
    %80 = arith.addf %77, %79 : vector<4x96xf32>
    %cst_84 = arith.constant 0.000000e+00 : f32
    %81 = vector.broadcast %cst_84 : f32 to vector<2x32xf32>
    %82 = vector.extract_strided_slice %80 {offsets = [0, 0], sizes = [2, 96], strides = [1, 1]} : vector<4x96xf32> to vector<2x96xf32>
    %c0_85 = arith.constant 0 : index
    %c0_86 = arith.constant 0 : index
    %83 = vector.load %arg12[%c0_85, %c0_86] : memref<32x96xf32, #tpu.memory_space<vmem>>, vector<32x96xf32>
    %cst_87 = arith.constant dense<0.000000e+00> : vector<2x96xf32>
    %84 = tpu.matmul %81, %83, %cst_87 {dimension_numbers = #tpu.dot_dimension_numbers<[1], [0], [0], [1], [0, 0, 1, 1], [], []>} : vector<2x32xf32>, vector<32x96xf32>, vector<2x96xf32> -> vector<2x96xf32>
    %c0_88 = arith.constant 0 : index
    %c0_89 = arith.constant 0 : index
    %85 = vector.load %arg13[%c0_88, %c0_89] : memref<1x96xf32, #tpu.memory_space<vmem>>, vector<1x96xf32>
    %86 = vector.broadcast %85 : vector<1x96xf32> to vector<2x96xf32>
    %87 = arith.addf %84, %86 : vector<2x96xf32>
    %88 = vector.extract_strided_slice %82 {offsets = [0, 0], sizes = [2, 32], strides = [1, 1]} : vector<2x96xf32> to vector<2x32xf32>
    %89 = vector.extract_strided_slice %87 {offsets = [0, 0], sizes = [2, 32], strides = [1, 1]} : vector<2x96xf32> to vector<2x32xf32>
    %90 = arith.addf %88, %89 : vector<2x32xf32>
    %91 = arith.negf %90 : vector<2x32xf32>
    %92 = math.exp %91 : vector<2x32xf32>
    %cst_90 = arith.constant 1.000000e+00 : f32
    %93 = vector.broadcast %cst_90 : f32 to vector<2x32xf32>
    %94 = arith.addf %93, %92 : vector<2x32xf32>
    %95 = arith.divf %93, %94 : vector<2x32xf32>
    %96 = vector.extract_strided_slice %82 {offsets = [0, 32], sizes = [2, 32], strides = [1, 1]} : vector<2x96xf32> to vector<2x32xf32>
    %97 = vector.extract_strided_slice %87 {offsets = [0, 32], sizes = [2, 32], strides = [1, 1]} : vector<2x96xf32> to vector<2x32xf32>
    %98 = arith.addf %96, %97 : vector<2x32xf32>
    %99 = arith.negf %98 : vector<2x32xf32>
    %100 = math.exp %99 : vector<2x32xf32>
    %cst_91 = arith.constant 1.000000e+00 : f32
    %101 = vector.broadcast %cst_91 : f32 to vector<2x32xf32>
    %102 = arith.addf %101, %100 : vector<2x32xf32>
    %103 = arith.divf %101, %102 : vector<2x32xf32>
    %104 = vector.extract_strided_slice %82 {offsets = [0, 64], sizes = [2, 32], strides = [1, 1]} : vector<2x96xf32> to vector<2x32xf32>
    %105 = vector.extract_strided_slice %87 {offsets = [0, 64], sizes = [2, 32], strides = [1, 1]} : vector<2x96xf32> to vector<2x32xf32>
    %106 = arith.mulf %95, %105 : vector<2x32xf32>
    %107 = arith.addf %104, %106 : vector<2x32xf32>
    %108 = math.tanh %107 : vector<2x32xf32>
    %cst_92 = arith.constant 1.000000e+00 : f32
    %109 = vector.broadcast %cst_92 : f32 to vector<2x32xf32>
    %110 = arith.subf %109, %103 : vector<2x32xf32>
    %111 = arith.mulf %110, %108 : vector<2x32xf32>
    %112 = arith.mulf %103, %81 : vector<2x32xf32>
    %113 = arith.addf %111, %112 : vector<2x32xf32>
    %114 = vector.extract_strided_slice %80 {offsets = [2, 0], sizes = [2, 96], strides = [1, 1]} : vector<4x96xf32> to vector<2x96xf32>
    %c0_93 = arith.constant 0 : index
    %c0_94 = arith.constant 0 : index
    %115 = vector.load %arg12[%c0_93, %c0_94] : memref<32x96xf32, #tpu.memory_space<vmem>>, vector<32x96xf32>
    %cst_95 = arith.constant dense<0.000000e+00> : vector<2x96xf32>
    %116 = tpu.matmul %113, %115, %cst_95 {dimension_numbers = #tpu.dot_dimension_numbers<[1], [0], [0], [1], [0, 0, 1, 1], [], []>} : vector<2x32xf32>, vector<32x96xf32>, vector<2x96xf32> -> vector<2x96xf32>
    %c0_96 = arith.constant 0 : index
    %c0_97 = arith.constant 0 : index
    %117 = vector.load %arg13[%c0_96, %c0_97] : memref<1x96xf32, #tpu.memory_space<vmem>>, vector<1x96xf32>
    %118 = vector.broadcast %117 : vector<1x96xf32> to vector<2x96xf32>
    %119 = arith.addf %116, %118 : vector<2x96xf32>
    %120 = vector.extract_strided_slice %114 {offsets = [0, 0], sizes = [2, 32], strides = [1, 1]} : vector<2x96xf32> to vector<2x32xf32>
    %121 = vector.extract_strided_slice %119 {offsets = [0, 0], sizes = [2, 32], strides = [1, 1]} : vector<2x96xf32> to vector<2x32xf32>
    %122 = arith.addf %120, %121 : vector<2x32xf32>
    %123 = arith.negf %122 : vector<2x32xf32>
    %124 = math.exp %123 : vector<2x32xf32>
    %cst_98 = arith.constant 1.000000e+00 : f32
    %125 = vector.broadcast %cst_98 : f32 to vector<2x32xf32>
    %126 = arith.addf %125, %124 : vector<2x32xf32>
    %127 = arith.divf %125, %126 : vector<2x32xf32>
    %128 = vector.extract_strided_slice %114 {offsets = [0, 32], sizes = [2, 32], strides = [1, 1]} : vector<2x96xf32> to vector<2x32xf32>
    %129 = vector.extract_strided_slice %119 {offsets = [0, 32], sizes = [2, 32], strides = [1, 1]} : vector<2x96xf32> to vector<2x32xf32>
    %130 = arith.addf %128, %129 : vector<2x32xf32>
    %131 = arith.negf %130 : vector<2x32xf32>
    %132 = math.exp %131 : vector<2x32xf32>
    %cst_99 = arith.constant 1.000000e+00 : f32
    %133 = vector.broadcast %cst_99 : f32 to vector<2x32xf32>
    %134 = arith.addf %133, %132 : vector<2x32xf32>
    %135 = arith.divf %133, %134 : vector<2x32xf32>
    %136 = vector.extract_strided_slice %114 {offsets = [0, 64], sizes = [2, 32], strides = [1, 1]} : vector<2x96xf32> to vector<2x32xf32>
    %137 = vector.extract_strided_slice %119 {offsets = [0, 64], sizes = [2, 32], strides = [1, 1]} : vector<2x96xf32> to vector<2x32xf32>
    %138 = arith.mulf %127, %137 : vector<2x32xf32>
    %139 = arith.addf %136, %138 : vector<2x32xf32>
    %140 = math.tanh %139 : vector<2x32xf32>
    %cst_100 = arith.constant 1.000000e+00 : f32
    %141 = vector.broadcast %cst_100 : f32 to vector<2x32xf32>
    %142 = arith.subf %141, %135 : vector<2x32xf32>
    %143 = arith.mulf %142, %140 : vector<2x32xf32>
    %144 = arith.mulf %135, %113 : vector<2x32xf32>
    %145 = arith.addf %143, %144 : vector<2x32xf32>
    %c0_101 = arith.constant 0 : index
    %c0_102 = arith.constant 0 : index
    %146 = vector.load %arg14[%c0_101, %c0_102] : memref<10x8xf32, #tpu.memory_space<vmem>>, vector<10x8xf32>
    %147 = math.tanh %146 : vector<10x8xf32>
    %c0_103 = arith.constant 0 : index
    %c0_104 = arith.constant 0 : index
    %148 = vector.load %arg15[%c0_103, %c0_104] : memref<32x32xf32, #tpu.memory_space<vmem>>, vector<32x32xf32>
    %cst_105 = arith.constant dense<0.000000e+00> : vector<2x32xf32>
    %149 = tpu.matmul %145, %148, %cst_105 {dimension_numbers = #tpu.dot_dimension_numbers<[1], [0], [0], [1], [0, 0, 1, 1], [], []>} : vector<2x32xf32>, vector<32x32xf32>, vector<2x32xf32> -> vector<2x32xf32>
    %c0_106 = arith.constant 0 : index
    %c0_107 = arith.constant 0 : index
    %150 = vector.load %arg16[%c0_106, %c0_107] : memref<1x32xf32, #tpu.memory_space<vmem>>, vector<1x32xf32>
    %151 = vector.broadcast %150 : vector<1x32xf32> to vector<2x32xf32>
    %152 = arith.addf %149, %151 : vector<2x32xf32>
    %c0_108 = arith.constant 0 : index
    %c0_109 = arith.constant 0 : index
    %153 = vector.load %arg17[%c0_108, %c0_109] : memref<8x32xf32, #tpu.memory_space<vmem>>, vector<8x32xf32>
    %cst_110 = arith.constant dense<0.000000e+00> : vector<10x32xf32>
    %154 = tpu.matmul %147, %153, %cst_110 {dimension_numbers = #tpu.dot_dimension_numbers<[1], [0], [0], [1], [0, 0, 1, 1], [], []>} : vector<10x8xf32>, vector<8x32xf32>, vector<10x32xf32> -> vector<10x32xf32>
    %c0_111 = arith.constant 0 : index
    %c0_112 = arith.constant 0 : index
    %155 = vector.load %arg18[%c0_111, %c0_112] : memref<1x32xf32, #tpu.memory_space<vmem>>, vector<1x32xf32>
    %156 = vector.broadcast %155 : vector<1x32xf32> to vector<10x32xf32>
    %157 = arith.addf %154, %156 : vector<10x32xf32>
    %c0_113 = arith.constant 0 : index
    %c0_114 = arith.constant 0 : index
    %158 = vector.load %arg19[%c0_113, %c0_114] : memref<8x32xf32, #tpu.memory_space<vmem>>, vector<8x32xf32>
    %cst_115 = arith.constant dense<0.000000e+00> : vector<10x32xf32>
    %159 = tpu.matmul %147, %158, %cst_115 {dimension_numbers = #tpu.dot_dimension_numbers<[1], [0], [0], [1], [0, 0, 1, 1], [], []>} : vector<10x8xf32>, vector<8x32xf32>, vector<10x32xf32> -> vector<10x32xf32>
    %c0_116 = arith.constant 0 : index
    %c0_117 = arith.constant 0 : index
    %160 = vector.load %arg20[%c0_116, %c0_117] : memref<1x32xf32, #tpu.memory_space<vmem>>, vector<1x32xf32>
    %161 = vector.broadcast %160 : vector<1x32xf32> to vector<10x32xf32>
    %162 = arith.addf %159, %161 : vector<10x32xf32>
    %c0_118 = arith.constant 0 : index
    %c0_119 = arith.constant 0 : index
    %163 = vector.load %arg21[%c0_118, %c0_119] : memref<32x32xf32, #tpu.memory_space<vmem>>, vector<32x32xf32>
    %164 = vector.extract_strided_slice %152 {offsets = [0, 0], sizes = [2, 8], strides = [1, 1]} : vector<2x32xf32> to vector<2x8xf32>
    %165 = vector.extract_strided_slice %157 {offsets = [0, 0], sizes = [10, 8], strides = [1, 1]} : vector<10x32xf32> to vector<10x8xf32>
    %166 = vector.extract_strided_slice %162 {offsets = [0, 0], sizes = [10, 8], strides = [1, 1]} : vector<10x32xf32> to vector<10x8xf32>
    %cst_120 = arith.constant dense<0.000000e+00> : vector<2x10xf32>
    %167 = tpu.matmul %164, %165, %cst_120 {dimension_numbers = #tpu.dot_dimension_numbers<[1], [1], [0], [0], [0, 0, 1, 0], [], []>} : vector<2x8xf32>, vector<10x8xf32>, vector<2x10xf32> -> vector<2x10xf32>
    %cst_121 = arith.constant 0.176776692 : f32
    %168 = vector.broadcast %cst_121 : f32 to vector<2x10xf32>
    %169 = arith.mulf %167, %168 : vector<2x10xf32>
    %cst_122 = arith.constant dense<0xFF800000> : vector<2xf32>
    %170 = vector.multi_reduction <maximumf>, %169, %cst_122 [1] : vector<2x10xf32> to vector<2xf32>
    %171 = vector.shape_cast %170 : vector<2xf32> to vector<2x1xf32>
    %172 = vector.broadcast %171 : vector<2x1xf32> to vector<2x10xf32>
    %173 = arith.subf %169, %172 : vector<2x10xf32>
    %174 = math.exp %173 : vector<2x10xf32>
    %cst_123 = arith.constant dense<0.000000e+00> : vector<2xf32>
    %175 = vector.multi_reduction <add>, %174, %cst_123 [1] : vector<2x10xf32> to vector<2xf32>
    %176 = vector.shape_cast %175 : vector<2xf32> to vector<2x1xf32>
    %177 = tpu.reciprocal %176 : vector<2x1xf32> -> vector<2x1xf32>
    %178 = vector.broadcast %177 : vector<2x1xf32> to vector<2x10xf32>
    %179 = arith.mulf %174, %178 : vector<2x10xf32>
    %cst_124 = arith.constant dense<0.000000e+00> : vector<2x8xf32>
    %180 = tpu.matmul %179, %166, %cst_124 {dimension_numbers = #tpu.dot_dimension_numbers<[1], [0], [0], [1], [0, 0, 1, 1], [], []>} : vector<2x10xf32>, vector<10x8xf32>, vector<2x8xf32> -> vector<2x8xf32>
    %181 = vector.extract_strided_slice %163 {offsets = [0, 0], sizes = [8, 32], strides = [1, 1]} : vector<32x32xf32> to vector<8x32xf32>
    %cst_125 = arith.constant dense<0.000000e+00> : vector<2x32xf32>
    %182 = tpu.matmul %180, %181, %cst_125 {dimension_numbers = #tpu.dot_dimension_numbers<[1], [0], [0], [1], [0, 0, 1, 1], [], []>} : vector<2x8xf32>, vector<8x32xf32>, vector<2x32xf32> -> vector<2x32xf32>
    %183 = vector.extract_strided_slice %152 {offsets = [0, 8], sizes = [2, 8], strides = [1, 1]} : vector<2x32xf32> to vector<2x8xf32>
    %184 = vector.extract_strided_slice %157 {offsets = [0, 8], sizes = [10, 8], strides = [1, 1]} : vector<10x32xf32> to vector<10x8xf32>
    %185 = vector.extract_strided_slice %162 {offsets = [0, 8], sizes = [10, 8], strides = [1, 1]} : vector<10x32xf32> to vector<10x8xf32>
    %cst_126 = arith.constant dense<0.000000e+00> : vector<2x10xf32>
    %186 = tpu.matmul %183, %184, %cst_126 {dimension_numbers = #tpu.dot_dimension_numbers<[1], [1], [0], [0], [0, 0, 1, 0], [], []>} : vector<2x8xf32>, vector<10x8xf32>, vector<2x10xf32> -> vector<2x10xf32>
    %cst_127 = arith.constant 0.176776692 : f32
    %187 = vector.broadcast %cst_127 : f32 to vector<2x10xf32>
    %188 = arith.mulf %186, %187 : vector<2x10xf32>
    %cst_128 = arith.constant dense<0xFF800000> : vector<2xf32>
    %189 = vector.multi_reduction <maximumf>, %188, %cst_128 [1] : vector<2x10xf32> to vector<2xf32>
    %190 = vector.shape_cast %189 : vector<2xf32> to vector<2x1xf32>
    %191 = vector.broadcast %190 : vector<2x1xf32> to vector<2x10xf32>
    %192 = arith.subf %188, %191 : vector<2x10xf32>
    %193 = math.exp %192 : vector<2x10xf32>
    %cst_129 = arith.constant dense<0.000000e+00> : vector<2xf32>
    %194 = vector.multi_reduction <add>, %193, %cst_129 [1] : vector<2x10xf32> to vector<2xf32>
    %195 = vector.shape_cast %194 : vector<2xf32> to vector<2x1xf32>
    %196 = tpu.reciprocal %195 : vector<2x1xf32> -> vector<2x1xf32>
    %197 = vector.broadcast %196 : vector<2x1xf32> to vector<2x10xf32>
    %198 = arith.mulf %193, %197 : vector<2x10xf32>
    %cst_130 = arith.constant dense<0.000000e+00> : vector<2x8xf32>
    %199 = tpu.matmul %198, %185, %cst_130 {dimension_numbers = #tpu.dot_dimension_numbers<[1], [0], [0], [1], [0, 0, 1, 1], [], []>} : vector<2x10xf32>, vector<10x8xf32>, vector<2x8xf32> -> vector<2x8xf32>
    %200 = vector.extract_strided_slice %163 {offsets = [8, 0], sizes = [8, 32], strides = [1, 1]} : vector<32x32xf32> to vector<8x32xf32>
    %cst_131 = arith.constant dense<0.000000e+00> : vector<2x32xf32>
    %201 = tpu.matmul %199, %200, %cst_131 {dimension_numbers = #tpu.dot_dimension_numbers<[1], [0], [0], [1], [0, 0, 1, 1], [], []>} : vector<2x8xf32>, vector<8x32xf32>, vector<2x32xf32> -> vector<2x32xf32>
    %202 = arith.addf %182, %201 : vector<2x32xf32>
    %203 = vector.extract_strided_slice %152 {offsets = [0, 16], sizes = [2, 8], strides = [1, 1]} : vector<2x32xf32> to vector<2x8xf32>
    %204 = vector.extract_strided_slice %157 {offsets = [0, 16], sizes = [10, 8], strides = [1, 1]} : vector<10x32xf32> to vector<10x8xf32>
    %205 = vector.extract_strided_slice %162 {offsets = [0, 16], sizes = [10, 8], strides = [1, 1]} : vector<10x32xf32> to vector<10x8xf32>
    %cst_132 = arith.constant dense<0.000000e+00> : vector<2x10xf32>
    %206 = tpu.matmul %203, %204, %cst_132 {dimension_numbers = #tpu.dot_dimension_numbers<[1], [1], [0], [0], [0, 0, 1, 0], [], []>} : vector<2x8xf32>, vector<10x8xf32>, vector<2x10xf32> -> vector<2x10xf32>
    %cst_133 = arith.constant 0.176776692 : f32
    %207 = vector.broadcast %cst_133 : f32 to vector<2x10xf32>
    %208 = arith.mulf %206, %207 : vector<2x10xf32>
    %cst_134 = arith.constant dense<0xFF800000> : vector<2xf32>
    %209 = vector.multi_reduction <maximumf>, %208, %cst_134 [1] : vector<2x10xf32> to vector<2xf32>
    %210 = vector.shape_cast %209 : vector<2xf32> to vector<2x1xf32>
    %211 = vector.broadcast %210 : vector<2x1xf32> to vector<2x10xf32>
    %212 = arith.subf %208, %211 : vector<2x10xf32>
    %213 = math.exp %212 : vector<2x10xf32>
    %cst_135 = arith.constant dense<0.000000e+00> : vector<2xf32>
    %214 = vector.multi_reduction <add>, %213, %cst_135 [1] : vector<2x10xf32> to vector<2xf32>
    %215 = vector.shape_cast %214 : vector<2xf32> to vector<2x1xf32>
    %216 = tpu.reciprocal %215 : vector<2x1xf32> -> vector<2x1xf32>
    %217 = vector.broadcast %216 : vector<2x1xf32> to vector<2x10xf32>
    %218 = arith.mulf %213, %217 : vector<2x10xf32>
    %cst_136 = arith.constant dense<0.000000e+00> : vector<2x8xf32>
    %219 = tpu.matmul %218, %205, %cst_136 {dimension_numbers = #tpu.dot_dimension_numbers<[1], [0], [0], [1], [0, 0, 1, 1], [], []>} : vector<2x10xf32>, vector<10x8xf32>, vector<2x8xf32> -> vector<2x8xf32>
    %220 = vector.extract_strided_slice %163 {offsets = [16, 0], sizes = [8, 32], strides = [1, 1]} : vector<32x32xf32> to vector<8x32xf32>
    %cst_137 = arith.constant dense<0.000000e+00> : vector<2x32xf32>
    %221 = tpu.matmul %219, %220, %cst_137 {dimension_numbers = #tpu.dot_dimension_numbers<[1], [0], [0], [1], [0, 0, 1, 1], [], []>} : vector<2x8xf32>, vector<8x32xf32>, vector<2x32xf32> -> vector<2x32xf32>
    %222 = arith.addf %202, %221 : vector<2x32xf32>
    %223 = vector.extract_strided_slice %152 {offsets = [0, 24], sizes = [2, 8], strides = [1, 1]} : vector<2x32xf32> to vector<2x8xf32>
    %224 = vector.extract_strided_slice %157 {offsets = [0, 24], sizes = [10, 8], strides = [1, 1]} : vector<10x32xf32> to vector<10x8xf32>
    %225 = vector.extract_strided_slice %162 {offsets = [0, 24], sizes = [10, 8], strides = [1, 1]} : vector<10x32xf32> to vector<10x8xf32>
    %cst_138 = arith.constant dense<0.000000e+00> : vector<2x10xf32>
    %226 = tpu.matmul %223, %224, %cst_138 {dimension_numbers = #tpu.dot_dimension_numbers<[1], [1], [0], [0], [0, 0, 1, 0], [], []>} : vector<2x8xf32>, vector<10x8xf32>, vector<2x10xf32> -> vector<2x10xf32>
    %cst_139 = arith.constant 0.176776692 : f32
    %227 = vector.broadcast %cst_139 : f32 to vector<2x10xf32>
    %228 = arith.mulf %226, %227 : vector<2x10xf32>
    %cst_140 = arith.constant dense<0xFF800000> : vector<2xf32>
    %229 = vector.multi_reduction <maximumf>, %228, %cst_140 [1] : vector<2x10xf32> to vector<2xf32>
    %230 = vector.shape_cast %229 : vector<2xf32> to vector<2x1xf32>
    %231 = vector.broadcast %230 : vector<2x1xf32> to vector<2x10xf32>
    %232 = arith.subf %228, %231 : vector<2x10xf32>
    %233 = math.exp %232 : vector<2x10xf32>
    %cst_141 = arith.constant dense<0.000000e+00> : vector<2xf32>
    %234 = vector.multi_reduction <add>, %233, %cst_141 [1] : vector<2x10xf32> to vector<2xf32>
    %235 = vector.shape_cast %234 : vector<2xf32> to vector<2x1xf32>
    %236 = tpu.reciprocal %235 : vector<2x1xf32> -> vector<2x1xf32>
    %237 = vector.broadcast %236 : vector<2x1xf32> to vector<2x10xf32>
    %238 = arith.mulf %233, %237 : vector<2x10xf32>
    %cst_142 = arith.constant dense<0.000000e+00> : vector<2x8xf32>
    %239 = tpu.matmul %238, %225, %cst_142 {dimension_numbers = #tpu.dot_dimension_numbers<[1], [0], [0], [1], [0, 0, 1, 1], [], []>} : vector<2x10xf32>, vector<10x8xf32>, vector<2x8xf32> -> vector<2x8xf32>
    %240 = vector.extract_strided_slice %163 {offsets = [24, 0], sizes = [8, 32], strides = [1, 1]} : vector<32x32xf32> to vector<8x32xf32>
    %cst_143 = arith.constant dense<0.000000e+00> : vector<2x32xf32>
    %241 = tpu.matmul %239, %240, %cst_143 {dimension_numbers = #tpu.dot_dimension_numbers<[1], [0], [0], [1], [0, 0, 1, 1], [], []>} : vector<2x8xf32>, vector<8x32xf32>, vector<2x32xf32> -> vector<2x32xf32>
    %242 = arith.addf %222, %241 : vector<2x32xf32>
    %c0_144 = arith.constant 0 : index
    %c0_145 = arith.constant 0 : index
    %243 = vector.load %arg22[%c0_144, %c0_145] : memref<1x32xf32, #tpu.memory_space<vmem>>, vector<1x32xf32>
    %244 = vector.broadcast %243 : vector<1x32xf32> to vector<2x32xf32>
    %245 = arith.addf %242, %244 : vector<2x32xf32>
    %c0_146 = arith.constant 0 : index
    %c0_147 = arith.constant 0 : index
    %246 = vector.load %arg23[%c0_146, %c0_147] : memref<2x32xf32, #tpu.memory_space<vmem>>, vector<2x32xf32>
    tpu.vector_store %arg23[%c0_146, %c0_147], %245 {strides = array<i32>} : memref<2x32xf32, #tpu.memory_space<vmem>>, vector<2x32xf32>,
    return
  }
}

</mosaic_0001>

<llo_original>
// kernel: style_encoder_forward.1
$region0: #{style_encoder_forward.1}
  #allocation0 [shape = 'u32[]', space=smem, size = 0x4, offset = 0x4, fixed_abs, tag = 'smem constant byte address 0x4 - core index']
  #allocation1 [shape = 'u32[72,128]{1,0:T(1,128)}', space=vmem, size = 0x9000, scoped, tag = 'internal scratch']
  %s0 = inlined_call_operand.vmem [shape: f32[32,16], index: 0, kind: input, shape index: {}]
  %s1 = inlined_call_operand.vmem [shape: f32[3,16,32], index: 1, kind: input, shape index: {}]
  %s2 = inlined_call_operand.vmem [shape: f32[3,16,32], index: 2, kind: input, shape index: {}]
  %s3 = inlined_call_operand.vmem [shape: f32[1,32], index: 3, kind: input, shape index: {}]
  %s4 = inlined_call_operand.hbm [shape: f32[3,8,16], index: 4, kind: input, shape index: {}]
  %s5 = inlined_call_operand.vmem [shape: f32[3,32,16], index: 5, kind: input, shape index: {}]
  %s6 = inlined_call_operand.vmem [shape: f32[1,16], index: 6, kind: input, shape index: {}]
  %s7 = inlined_call_operand.vmem [shape: f32[3,4,8], index: 7, kind: input, shape index: {}]
  %s8 = inlined_call_operand.vmem [shape: f32[3,16,16], index: 8, kind: input, shape index: {}]
  %s9 = inlined_call_operand.vmem [shape: f32[1,16], index: 9, kind: input, shape index: {}]
  %s10 = inlined_call_operand.hbm [shape: f32[16,96], index: 10, kind: input, shape index: {}]
  %s11 = inlined_call_operand.hbm [shape: f32[1,96], index: 11, kind: input, shape index: {}]
  %s12 = inlined_call_operand.vmem [shape: f32[32,96], index: 12, kind: input, shape index: {}]
  %s13 = inlined_call_operand.hbm [shape: f32[1,96], index: 13, kind: input, shape index: {}]
  %s14 = inlined_call_operand.vmem [shape: f32[10,8], index: 14, kind: input, shape index: {}]
  %s15 = inlined_call_operand.hbm [shape: f32[32,32], index: 15, kind: input, shape index: {}]
  %s16 = inlined_call_operand.hbm [shape: f32[1,32], index: 16, kind: input, shape index: {}]
  %s17 = inlined_call_operand.hbm [shape: f32[8,32], index: 17, kind: input, shape index: {}]
  %s18 = inlined_call_operand.vmem [shape: f32[1,32], index: 18, kind: input, shape index: {}]
  %s19 = inlined_call_operand.hbm [shape: f32[8,32], index: 19, kind: input, shape index: {}]
  %s20 = inlined_call_operand.vmem [shape: f32[1,32], index: 20, kind: input, shape index: {}]
  %s21 = inlined_call_operand.hbm [shape: f32[32,32], index: 21, kind: input, shape index: {}]
  %s22 = inlined_call_operand.vmem [shape: f32[1,32], index: 22, kind: input, shape index: {}]
  %s23 = inlined_call_operand.hbm [shape: f32[2,32], index: 23, kind: output, shape index: {}]
  %s24 = sld [smem:[#allocation0]]
  $region138: #{style_encoder_forward.1} parent=0
    _
  %s26 = ssub.s32 1, %s24
  %s27 = scalar_select 0, %s26, %s24
  $region1: #{style_encoder_forward.1} parent=0
    #allocation2 [shape = 'u8[12288]{0}', space=vmem, size = 0x3000, scoped, tag = 'input window, operand 4, single buffered']
    #allocation3 [shape = 's32[1]{0}', space=sflag, size = 0x4, scoped, tag = 'scoped memory for style_encoder_forward.1']
    #allocation4 [shape = 's32[1]{0}', space=sflag, size = 0x4, scoped, tag = 'scoped memory for style_encoder_forward.1']
    #allocation5 [shape = 'u8[8192]{0}', space=vmem, size = 0x2000, scoped, tag = 'input window, operand 10, single buffered']
    #allocation6 [shape = 's32[1]{0}', space=sflag, size = 0x4, scoped, tag = 'scoped memory for style_encoder_forward.1']
    #allocation7 [shape = 'u8[512]{0}', space=vmem, size = 0x400, scoped, tag = 'input window, operand 11, single buffered']
    #allocation8 [shape = 'u8[512]{0}', space=vmem, size = 0x400, scoped, tag = 'input window, operand 13, single buffered']
    #allocation9 [shape = 's32[1]{0}', space=sflag, size = 0x4, scoped, tag = 'scoped memory for style_encoder_forward.1']
    #allocation10 [shape = 'u8[16384]{0}', space=vmem, size = 0x4000, scoped, tag = 'input window, operand 15, single buffered']
    #allocation11 [shape = 'u8[512]{0}', space=vmem, size = 0x400, scoped, tag = 'input window, operand 16, single buffered']
    #allocation12 [shape = 's32[1]{0}', space=sflag, size = 0x4, scoped, tag = 'scoped memory for style_encoder_forward.1']
    #allocation13 [shape = 'u8[4096]{0}', space=vmem, size = 0x1000, scoped, tag = 'input window, operand 17, single buffered']
    #allocation14 [shape = 'u8[4096]{0}', space=vmem, size = 0x1000, scoped, tag = 'input window, operand 19, single buffered']
    #allocation15 [shape = 's32[1]{0}', space=sflag, size = 0x4, scoped, tag = 'scoped memory for style_encoder_forward.1']
    #allocation16 [shape = 'u8[16384]{0}', space=vmem, size = 0x4000, scoped, tag = 'input window, operand 21, single buffered']
    #allocation17 [shape = 'u8[1024]{0}', space=vmem, size = 0x400, scoped, tag = 'output window, operand 0, single buffered']
    %28 = vsyncpa [#allocation3], 0
    %29 = vsyncpa [#allocation6], 0
    %30 = vsyncpa [#allocation9], 0
    %31 = vsyncpa [#allocation12], 0
    %32 = vsyncpa [#allocation15], 0
    %33 = vsyncpa [#allocation4], 0
    // Predicated region
    $region2: #{style_encoder_forward.1} parent=1 // pred_check
      _
    $region3: #{style_encoder_forward.1} parent=1 // pred_check_branch
      %35 = sbr.rel (0) target = $region5
    $region4: #{style_encoder_forward.1} parent=1 // pred_region
      _
    $region5: #{style_encoder_forward.1} parent=1 // pred_fallthru
      _
    // Predicated region
    $region6: #{style_encoder_forward.1} parent=1 // pred_check
      _
    $region7: #{style_encoder_forward.1} parent=1 // pred_check_branch
      %37 = sbr.rel (0) target = $region9
    $region8: #{style_encoder_forward.1} parent=1 // pred_region
      _
    $region9: #{style_encoder_forward.1} parent=1 // pred_fallthru
      _
    // Predicated region
    $region10: #{style_encoder_forward.1} parent=1 // pred_check
      _
    $region11: #{style_encoder_forward.1} parent=1 // pred_check_branch
      %39 = sbr.rel (0) target = $region13
    $region12: #{style_encoder_forward.1} parent=1 // pred_region
      _
    $region13: #{style_encoder_forward.1} parent=1 // pred_fallthru
      _
    // Predicated region
    $region14: #{style_encoder_forward.1} parent=1 // pred_check
      _
    $region15: #{style_encoder_forward.1} parent=1 // pred_check_branch
      %41 = sbr.rel (0) target = $region17
    $region16: #{style_encoder_forward.1} parent=1 // pred_region
      _
    $region17: #{style_encoder_forward.1} parent=1 // pred_fallthru
      _
    // Predicated region
    $region18: #{style_encoder_forward.1} parent=1 // pred_check
      _
    $region19: #{style_encoder_forward.1} parent=1 // pred_check_branch
      %43 = sbr.rel (0) target = $region21
    $region20: #{style_encoder_forward.1} parent=1 // pred_region
      %45 = vsyncadd [#allocation3], 0
      %s46 = sshll.u32 %s4, 4
      %s47 = int_to_ptr.hbm [resolvable:$true] %s46
      %s48 = sshll.u32 [#allocation2], 4
      %s49 = int_to_ptr.vmem [resolvable:$true] %s48
      %54 = dma.hbm_to_vmem [thread:$0]  %s47, 384, %s49, [#allocation3], 128, 128, 8
    $region21: #{style_encoder_forward.1} parent=1 // pred_fallthru
      _
    // Predicated region
    $region22: #{style_encoder_forward.1} parent=1 // pred_check
      _
    $region23: #{style_encoder_forward.1} parent=1 // pred_check_branch
      %56 = sbr.rel (0) target = $region25
    $region24: #{style_encoder_forward.1} parent=1 // pred_region
      _
    $region25: #{style_encoder_forward.1} parent=1 // pred_fallthru
      _
    // Predicated region
    $region26: #{style_encoder_forward.1} parent=1 // pred_check
      _
    $region27: #{style_encoder_forward.1} parent=1 // pred_check_branch
      %58 = sbr.rel (0) target = $region29
    $region28: #{style_encoder_forward.1} parent=1 // pred_region
      _
    $region29: #{style_encoder_forward.1} parent=1 // pred_fallthru
      _
    // Predicated region
    $region30: #{style_encoder_forward.1} parent=1 // pred_check
      _
    $region31: #{style_encoder_forward.1} parent=1 // pred_check_branch
      %60 = sbr.rel (0) target = $region33
    $region32: #{style_encoder_forward.1} parent=1 // pred_region
      _
    $region33: #{style_encoder_forward.1} parent=1 // pred_fallthru
      _
    // Predicated region
    $region34: #{style_encoder_forward.1} parent=1 // pred_check
      _
    $region35: #{style_encoder_forward.1} parent=1 // pred_check_branch
      %62 = sbr.rel (0) target = $region37
    $region36: #{style_encoder_forward.1} parent=1 // pred_region
      _
    $region37: #{style_encoder_forward.1} parent=1 // pred_fallthru
      _
    // Predicated region
    $region38: #{style_encoder_forward.1} parent=1 // pred_check
      _
    $region39: #{style_encoder_forward.1} parent=1 // pred_check_branch
      %64 = sbr.rel (0) target = $region41
    $region40: #{style_encoder_forward.1} parent=1 // pred_region
      _
    $region41: #{style_encoder_forward.1} parent=1 // pred_fallthru
      _
    // Predicated region
    $region42: #{style_encoder_forward.1} parent=1 // pred_check
      _
    $region43: #{style_encoder_forward.1} parent=1 // pred_check_branch
      %66 = sbr.rel (0) target = $region45
    $region44: #{style_encoder_forward.1} parent=1 // pred_region
      %68 = vsyncadd [#allocation6], 0
      %s69 = sshll.u32 %s10, 4
      %s70 = int_to_ptr.hbm [resolvable:$true] %s69
      %s71 = sshll.u32 [#allocation5], 4
      %s72 = int_to_ptr.vmem [resolvable:$true] %s71
      %77 = dma.hbm_to_vmem [thread:$0]  %s70, 256, %s72, [#allocation6], 128, 128, 8
    $region45: #{style_encoder_forward.1} parent=1 // pred_fallthru
      _
    // Predicated region
    $region46: #{style_encoder_forward.1} parent=1 // pred_check
      _
    $region47: #{style_encoder_forward.1} parent=1 // pred_check_branch
      %79 = sbr.rel (0) target = $region49
    $region48: #{style_encoder_forward.1} parent=1 // pred_region
      %81 = vsyncadd [#allocation6], 0
      %s83 = sshll.u32 %s11, 4
      %s84 = int_to_ptr.hbm [resolvable:$true] %s83
      %s85 = sshll.u32 [#allocation7], 4
      %s86 = int_to_ptr.vmem [resolvable:$true] %s85
      %88 = dma.hbm_to_vmem [thread:$0]  %s84, 16, %s86, [#allocation6]
    $region49: #{style_encoder_forward.1} parent=1 // pred_fallthru
      _
    // Predicated region
    $region50: #{style_encoder_forward.1} parent=1 // pred_check
      _
    $region51: #{style_encoder_forward.1} parent=1 // pred_check_branch
      %90 = sbr.rel (0) target = $region53
    $region52: #{style_encoder_forward.1} parent=1 // pred_region
      _
    $region53: #{style_encoder_forward.1} parent=1 // pred_fallthru
      _
    // Predicated region
    $region54: #{style_encoder_forward.1} parent=1 // pred_check
      _
    $region55: #{style_encoder_forward.1} parent=1 // pred_check_branch
      %92 = sbr.rel (0) target = $region57
    $region56: #{style_encoder_forward.1} parent=1 // pred_region
      %94 = vsyncadd [#allocation9], 0
      %s96 = sshll.u32 %s13, 4
      %s97 = int_to_ptr.hbm [resolvable:$true] %s96
      %s98 = sshll.u32 [#allocation8], 4
      %s99 = int_to_ptr.vmem [resolvable:$true] %s98
      %101 = dma.hbm_to_vmem [thread:$0]  %s97, 16, %s99, [#allocation9]
    $region57: #{style_encoder_forward.1} parent=1 // pred_fallthru
      _
    // Predicated region
    $region58: #{style_encoder_forward.1} parent=1 // pred_check
      _
    $region59: #{style_encoder_forward.1} parent=1 // pred_check_branch
      %103 = sbr.rel (0) target = $region61
    $region60: #{style_encoder_forward.1} parent=1 // pred_region
      _
    $region61: #{style_encoder_forward.1} parent=1 // pred_fallthru
      _
    // Predicated region
    $region62: #{style_encoder_forward.1} parent=1 // pred_check
      _
    $region63: #{style_encoder_forward.1} parent=1 // pred_check_branch
      %105 = sbr.rel (0) target = $region65
    $region64: #{style_encoder_forward.1} parent=1 // pred_region
      %107 = vsyncadd [#allocation9], 0
      %s108 = sshll.u32 %s15, 4
      %s109 = int_to_ptr.hbm [resolvable:$true] %s108
      %s110 = sshll.u32 [#allocation10], 4
      %s111 = int_to_ptr.vmem [resolvable:$true] %s110
      %116 = dma.hbm_to_vmem [thread:$0]  %s109, 512, %s111, [#allocation9], 128, 128, 8
    $region65: #{style_encoder_forward.1} parent=1 // pred_fallthru
      _
    // Predicated region
    $region66: #{style_encoder_forward.1} parent=1 // pred_check
      _
    $region67: #{style_encoder_forward.1} parent=1 // pred_check_branch
      %118 = sbr.rel (0) target = $region69
    $region68: #{style_encoder_forward.1} parent=1 // pred_region
      %120 = vsyncadd [#allocation12], 0
      %s122 = sshll.u32 %s16, 4
      %s123 = int_to_ptr.hbm [resolvable:$true] %s122
      %s124 = sshll.u32 [#allocation11], 4
      %s125 = int_to_ptr.vmem [resolvable:$true] %s124
      %127 = dma.hbm_to_vmem [thread:$0]  %s123, 16, %s125, [#allocation12]
    $region69: #{style_encoder_forward.1} parent=1 // pred_fallthru
      _
    // Predicated region
    $region70: #{style_encoder_forward.1} parent=1 // pred_check
      _
    $region71: #{style_encoder_forward.1} parent=1 // pred_check_branch
      %129 = sbr.rel (0) target = $region73
    $region72: #{style_encoder_forward.1} parent=1 // pred_region
      %131 = vsyncadd [#allocation12], 0
      %s133 = sshll.u32 %s17, 4
      %s134 = int_to_ptr.hbm [resolvable:$true] %s133
      %s135 = sshll.u32 [#allocation13], 4
      %s136 = int_to_ptr.vmem [resolvable:$true] %s135
      %138 = dma.hbm_to_vmem [thread:$0]  %s134, 128, %s136, [#allocation12]
    $region73: #{style_encoder_forward.1} parent=1 // pred_fallthru
      _
    // Predicated region
    $region74: #{style_encoder_forward.1} parent=1 // pred_check
      _
    $region75: #{style_encoder_forward.1} parent=1 // pred_check_branch
      %140 = sbr.rel (0) target = $region77
    $region76: #{style_encoder_forward.1} parent=1 // pred_region
      _
    $region77: #{style_encoder_forward.1} parent=1 // pred_fallthru
      _
    // Predicated region
    $region78: #{style_encoder_forward.1} parent=1 // pred_check
      _
    $region79: #{style_encoder_forward.1} parent=1 // pred_check_branch
      %142 = sbr.rel (0) target = $region81
    $region80: #{style_encoder_forward.1} parent=1 // pred_region
      %144 = vsyncadd [#allocation15], 0
      %s146 = sshll.u32 %s19, 4
      %s147 = int_to_ptr.hbm [resolvable:$true] %s146
      %s148 = sshll.u32 [#allocation14], 4
      %s149 = int_to_ptr.vmem [resolvable:$true] %s148
      %151 = dma.hbm_to_vmem [thread:$0]  %s147, 128, %s149, [#allocation15]
    $region81: #{style_encoder_forward.1} parent=1 // pred_fallthru
      _
    // Predicated region
    $region82: #{style_encoder_forward.1} parent=1 // pred_check
      _
    $region83: #{style_encoder_forward.1} parent=1 // pred_check_branch
      %153 = sbr.rel (0) target = $region85
    $region84: #{style_encoder_forward.1} parent=1 // pred_region
      _
    $region85: #{style_encoder_forward.1} parent=1 // pred_fallthru
      _
    // Predicated region
    $region86: #{style_encoder_forward.1} parent=1 // pred_check
      _
    $region87: #{style_encoder_forward.1} parent=1 // pred_check_branch
      %155 = sbr.rel (0) target = $region89
    $region88: #{style_encoder_forward.1} parent=1 // pred_region
      %157 = vsyncadd [#allocation15], 0
      %s158 = sshll.u32 %s21, 4
      %s159 = int_to_ptr.hbm [resolvable:$true] %s158
      %s160 = sshll.u32 [#allocation16], 4
      %s161 = int_to_ptr.vmem [resolvable:$true] %s160
      %166 = dma.hbm_to_vmem [thread:$0]  %s159, 512, %s161, [#allocation15], 128, 128, 8
    $region89: #{style_encoder_forward.1} parent=1 // pred_fallthru
      _
    // Predicated region
    $region90: #{style_encoder_forward.1} parent=1 // pred_check
      _
    $region91: #{style_encoder_forward.1} parent=1 // pred_check_branch
      %168 = sbr.rel (0) target = $region93
    $region92: #{style_encoder_forward.1} parent=1 // pred_region
      _
    $region93: #{style_encoder_forward.1} parent=1 // pred_fallthru
      _
    // Predicated region
    $region94: #{style_encoder_forward.1} parent=1 // pred_check
      _
    $region95: #{style_encoder_forward.1} parent=1 // pred_check_branch
      %170 = sbr.rel (0) target = $region97
    $region96: #{style_encoder_forward.1} parent=1 // pred_region
      %172 = dma.done [#allocation3], 384
    $region97: #{style_encoder_forward.1} parent=1 // pred_fallthru
      _
    // Predicated region
    $region98: #{style_encoder_forward.1} parent=1 // pred_check
      _
    $region99: #{style_encoder_forward.1} parent=1 // pred_check_branch
      %174 = sbr.rel (0) target = $region101
    $region100: #{style_encoder_forward.1} parent=1 // pred_region
      %176 = dma.done [#allocation6], 256
    $region101: #{style_encoder_forward.1} parent=1 // pred_fallthru
      _
    // Predicated region
    $region102: #{style_encoder_forward.1} parent=1 // pred_check
      _
    $region103: #{style_encoder_forward.1} parent=1 // pred_check_branch
      %178 = sbr.rel (0) target = $region105
    $region104: #{style_encoder_forward.1} parent=1 // pred_region
      %180 = dma.done [#allocation6], 16
    $region105: #{style_encoder_forward.1} parent=1 // pred_fallthru
      _
    // Predicated region
    $region106: #{style_encoder_forward.1} parent=1 // pred_check
      _
    $region107: #{style_encoder_forward.1} parent=1 // pred_check_branch
      %182 = sbr.rel (0) target = $region109
    $region108: #{style_encoder_forward.1} parent=1 // pred_region
      %184 = dma.done [#allocation9], 16
    $region109: #{style_encoder_forward.1} parent=1 // pred_fallthru
      _
    // Predicated region
    $region110: #{style_encoder_forward.1} parent=1 // pred_check
      _
    $region111: #{style_encoder_forward.1} parent=1 // pred_check_branch
      %186 = sbr.rel (0) target = $region113
    $region112: #{style_encoder_forward.1} parent=1 // pred_region
      %188 = dma.done [#allocation9], 512
    $region113: #{style_encoder_forward.1} parent=1 // pred_fallthru
      _
    // Predicated region
    $region114: #{style_encoder_forward.1} parent=1 // pred_check
      _
    $region115: #{style_encoder_forward.1} parent=1 // pred_check_branch
      %190 = sbr.rel (0) target = $region117
    $region116: #{style_encoder_forward.1} parent=1 // pred_region
      %192 = dma.done [#allocation12], 16
    $region117: #{style_encoder_forward.1} parent=1 // pred_fallthru
      _
    // Predicated region
    $region118: #{style_encoder_forward.1} parent=1 // pred_check
      _
    $region119: #{style_encoder_forward.1} parent=1 // pred_check_branch
      %194 = sbr.rel (0) target = $region121
    $region120: #{style_encoder_forward.1} parent=1 // pred_region
      %196 = dma.done [#allocation12], 128
    $region121: #{style_encoder_forward.1} parent=1 // pred_fallthru
      _
    // Predicated region
    $region122: #{style_encoder_forward.1} parent=1 // pred_check
      _
    $region123: #{style_encoder_forward.1} parent=1 // pred_check_branch
      %198 = sbr.rel (0) target = $region125
    $region124: #{style_encoder_forward.1} parent=1 // pred_region
      %200 = dma.done [#allocation15], 128
    $region125: #{style_encoder_forward.1} parent=1 // pred_fallthru
      _
    // Predicated region
    $region126: #{style_encoder_forward.1} parent=1 // pred_check
      _
    $region127: #{style_encoder_forward.1} parent=1 // pred_check_branch
      %202 = sbr.rel (0) target = $region129
    $region128: #{style_encoder_forward.1} parent=1 // pred_region
      %204 = dma.done [#allocation15], 512
    $region129: #{style_encoder_forward.1} parent=1 // pred_fallthru
      _
    %v205 = vld [vmem:[%s0] sm:$0xff]
    %v206 = vld [vmem:[%s0 + $0x8] sm:$0xff]
    %v207 = vld [vmem:[%s0 + $0x10] sm:$0xff]
    %v208 = vld [vmem:[%s0 + $0x18] sm:$0xff]
    %v209 = vld [vmem:[%s1] sm:$0xff]
    %v210 = vld [vmem:[%s1 + $0x8] sm:$0xff]
    %vm211 = vcmask 261120
    %v213 = vsel %vm211, %v209, 0
    %v216 = vsel %vm211, %v210, 0
    %218 = vmatpush.msra.mxu0 0.0
    %219 = vmatpush.msra.mxu0 0.0
    %220 = vmatpush.msra.mxu0 0.0
    %221 = vmatpush.msra.mxu0 0.0
    %222 = vmatpush.msra.mxu0 0.0
    %223 = vmatpush.msra.mxu0 0.0
    %224 = vmatpush.msra.mxu0 0.0
    %225 = vmatpush.msra.mxu0 0.0
    %226 = vmatpush.msra.mxu0 0.0
    %227 = vmatpush.msra.mxu0 0.0
    %228 = vmatpush.msra.mxu0 0.0
    %229 = vmatpush.msra.mxu0 0.0
    %230 = vmatpush.msra.mxu0 %v208
    %231 = vmatpush.msra.mxu0 %v207
    %232 = vmatpush.msra.mxu0 %v206
    %233 = vmatpush.msra.mxu0 %v205
    %234 = vmatmul.f32.gmra.mxu0 %v213
    %v235 = vpop.f32.mrf.mxu0
    %v236 = vadd.f32 0.0, %v235
    %237 = vmatmul.f32.gmra.mxu0 %v216
    %v238 = vpop.f32.mrf.mxu0
    %v239 = vadd.f32 0.0, %v238
    %240 = vdwg.mxu0
    %v241 = vld [vmem:[%s2] sm:$0xff]
    %v242 = vld [vmem:[%s2 + $0x8] sm:$0xff]
    %s243 = scalar_lea.vmem %s1, 16
    %v244 = vld [vmem:[%s243] sm:$0xff]
    %v245 = vld [vmem:[%s243 + $0x8] sm:$0xff]
    %v247 = vsel %vm211, %v244, 0
    %v250 = vsel %vm211, %v245, 0
    %252 = vmatpush.msra.mxu0 0.0
    %253 = vmatpush.msra.mxu0 0.0
    %254 = vmatpush.msra.mxu0 0.0
    %255 = vmatpush.msra.mxu0 0.0
    %256 = vmatpush.msra.mxu0 0.0
    %257 = vmatpush.msra.mxu0 0.0
    %258 = vmatpush.msra.mxu0 0.0
    %259 = vmatpush.msra.mxu0 0.0
    %260 = vmatpush.msra.mxu0 0.0
    %261 = vmatpush.msra.mxu0 0.0
    %262 = vmatpush.msra.mxu0 0.0
    %263 = vmatpush.msra.mxu0 0.0
    %264 = vmatpush.msra.mxu0 %v208
    %265 = vmatpush.msra.mxu0 %v207
    %266 = vmatpush.msra.mxu0 %v206
    %267 = vmatpush.msra.mxu0 %v205
    %268 = vmatmul.f32.gmra.mxu0 %v247
    %v269 = vpop.f32.mrf.mxu0
    %v270 = vadd.f32 0.0, %v269
    %271 = vmatmul.f32.gmra.mxu0 %v250
    %v272 = vpop.f32.mrf.mxu0
    %v273 = vadd.f32 0.0, %v272
    %274 = vdwg.mxu0
    %s275 = scalar_lea.vmem %s2, 16
    %v276 = vld [vmem:[%s275] sm:$0xff]
    %v277 = vld [vmem:[%s275 + $0x8] sm:$0xff]
    %vm278 = vcmask 130048
    %v280 = vsel %vm278, %v270, 0
    %v283 = vsel %vm278, %v273, 0
    %285 = vmatpush.msra.mxu0 0.0
    %286 = vmatpush.msra.mxu0 0.0
    %287 = vmatpush.msra.mxu0 0.0
    %288 = vmatpush.msra.mxu0 0.0
    %289 = vmatpush.msra.mxu0 0.0
    %290 = vmatpush.msra.mxu0 0.0
    %291 = vmatpush.msra.mxu0 0.0
    %292 = vmatpush.msra.mxu0 0.0
    %293 = vmatpush.msra.mxu0 0.0
    %294 = vmatpush.msra.mxu0 0.0
    %295 = vmatpush.msra.mxu0 0.0
    %296 = vmatpush.msra.mxu0 0.0
    %297 = vmatpush.msra.mxu0 0.0
    %298 = vmatpush.msra.mxu0 0.0
    %299 = vmatpush.msra.mxu0 %v277
    %300 = vmatpush.msra.mxu0 %v276
    %301 = vmatmul.f32.gmra.mxu0 %v280
    %v302 = vpop.f32.mrf.mxu0
    %v303 = vadd.f32 0.0, %v302
    %304 = vmatmul.f32.gmra.mxu0 %v283
    %v305 = vpop.f32.mrf.mxu0
    %v306 = vadd.f32 0.0, %v305
    %307 = vdwg.mxu0
    %v309 = vsel %vm278, %v236, 0
    %v312 = vsel %vm278, %v239, 0
    %314 = vmatpush.msra.mxu0 0.0
    %315 = vmatpush.msra.mxu0 0.0
    %316 = vmatpush.msra.mxu0 0.0
    %317 = vmatpush.msra.mxu0 0.0
    %318 = vmatpush.msra.mxu0 0.0
    %319 = vmatpush.msra.mxu0 0.0
    %320 = vmatpush.msra.mxu0 0.0
    %321 = vmatpush.msra.mxu0 0.0
    %322 = vmatpush.msra.mxu0 0.0
    %323 = vmatpush.msra.mxu0 0.0
    %324 = vmatpush.msra.mxu0 0.0
    %325 = vmatpush.msra.mxu0 0.0
    %326 = vmatpush.msra.mxu0 0.0
    %327 = vmatpush.msra.mxu0 0.0
    %328 = vmatpush.msra.mxu0 %v242
    %329 = vmatpush.msra.mxu0 %v241
    %330 = vmatmul.f32.gmra.mxu0 %v309
    %v331 = vpop.f32.mrf.mxu0
    %v332 = vadd.f32 %v303, %v331
    %333 = vmatmul.f32.gmra.mxu0 %v312
    %v334 = vpop.f32.mrf.mxu0
    %v335 = vadd.f32 %v306, %v334
    %336 = vdwg.mxu0
    %s337 = scalar_lea.vmem %s1, 32
    %v338 = vld [vmem:[%s337] sm:$0xff]
    %v339 = vld [vmem:[%s337 + $0x8] sm:$0xff]
    %v341 = vsel %vm211, %v338, 0
    %v344 = vsel %vm211, %v339, 0
    %346 = vmatpush.msra.mxu0 0.0
    %347 = vmatpush.msra.mxu0 0.0
    %348 = vmatpush.msra.mxu0 0.0
    %349 = vmatpush.msra.mxu0 0.0
    %350 = vmatpush.msra.mxu0 0.0
    %351 = vmatpush.msra.mxu0 0.0
    %352 = vmatpush.msra.mxu0 0.0
    %353 = vmatpush.msra.mxu0 0.0
    %354 = vmatpush.msra.mxu0 0.0
    %355 = vmatpush.msra.mxu0 0.0
    %356 = vmatpush.msra.mxu0 0.0
    %357 = vmatpush.msra.mxu0 0.0
    %358 = vmatpush.msra.mxu0 %v208
    %359 = vmatpush.msra.mxu0 %v207
    %360 = vmatpush.msra.mxu0 %v206
    %361 = vmatpush.msra.mxu0 %v205
    %362 = vmatmul.f32.gmra.mxu0 %v341
    %v363 = vpop.f32.mrf.mxu0
    %v364 = vadd.f32 0.0, %v363
    %365 = vmatmul.f32.gmra.mxu0 %v344
    %v366 = vpop.f32.mrf.mxu0
    %v367 = vadd.f32 0.0, %v366
    %368 = vdwg.mxu0
    %s369 = scalar_lea.vmem %s2, 32
    %v370 = vld [vmem:[%s369] sm:$0xff]
    %v371 = vld [vmem:[%s369 + $0x8] sm:$0xff]
    %v373 = vsel %vm278, %v364, 0
    %v376 = vsel %vm278, %v367, 0
    %378 = vmatpush.msra.mxu0 0.0
    %379 = vmatpush.msra.mxu0 0.0
    %380 = vmatpush.msra.mxu0 0.0
    %381 = vmatpush.msra.mxu0 0.0
    %382 = vmatpush.msra.mxu0 0.0
    %383 = vmatpush.msra.mxu0 0.0
    %384 = vmatpush.msra.mxu0 0.0
    %385 = vmatpush.msra.mxu0 0.0
    %386 = vmatpush.msra.mxu0 0.0
    %387 = vmatpush.msra.mxu0 0.0
    %388 = vmatpush.msra.mxu0 0.0
    %389 = vmatpush.msra.mxu0 0.0
    %390 = vmatpush.msra.mxu0 0.0
    %391 = vmatpush.msra.mxu0 0.0
    %392 = vmatpush.msra.mxu0 %v371
    %393 = vmatpush.msra.mxu0 %v370
    %394 = vmatmul.f32.gmra.mxu0 %v373
    %v395 = vpop.f32.mrf.mxu0
    %v396 = vadd.f32 0.0, %v395
    %397 = vmatmul.f32.gmra.mxu0 %v376
    %v398 = vpop.f32.mrf.mxu0
    %v399 = vadd.f32 0.0, %v398
    %400 = vdwg.mxu0
    %v401 = vadd.f32 %v332, %v396
    %v402 = vadd.f32 %v335, %v399
    %v403 = vld [vmem:[%s3] sm:$0x1]
    %v405 = vperm.slane %v403, 0
    %v407 = vadd.f32 %v401, %v405
    %v408 = vadd.f32 %v402, %v405
    %v409 = vmax.f32 %v407, 0.0
    %v410 = vmax.f32 %v408, 0.0
    %v411 = vld [vmem:[#allocation2] sm:$0xff]
    %v413 = vsel %vm278, %v411, 0
    %415 = vmatpush.msra.mxu0 0.0
    %416 = vmatpush.msra.mxu0 0.0
    %417 = vmatpush.msra.mxu0 0.0
    %418 = vmatpush.msra.mxu0 0.0
    %419 = vmatpush.msra.mxu0 0.0
    %420 = vmatpush.msra.mxu0 0.0
    %421 = vmatpush.msra.mxu0 0.0
    %422 = vmatpush.msra.mxu0 0.0
    %423 = vmatpush.msra.mxu0 0.0
    %424 = vmatpush.msra.mxu0 0.0
    %425 = vmatpush.msra.mxu0 0.0
    %426 = vmatpush.msra.mxu0 0.0
    %427 = vmatpush.msra.mxu0 0.0
    %428 = vmatpush.msra.mxu0 0.0
    %429 = vmatpush.msra.mxu0 %v410
    %430 = vmatpush.msra.mxu0 %v409
    %431 = vmatmul.f32.gmra.mxu0 %v413
    %v432 = vpop.f32.mrf.mxu0
    %v433 = vadd.f32 0.0, %v432
    %434 = vdwg.mxu0
    %v435 = vld [vmem:[%s5] sm:$0xff]
    %v436 = vld [vmem:[%s5 + $0x8] sm:$0xff]
    %v437 = vld [vmem:[%s5 + $0x10] sm:$0xff]
    %v438 = vld [vmem:[%s5 + $0x18] sm:$0xff]
    %s439 = scalar_lea.vmem [#allocation2], 8
    %v440 = vld [vmem:[%s439] sm:$0xff]
    %v442 = vsel %vm278, %v440, 0
    %444 = vmatpush.msra.mxu0 0.0
    %445 = vmatpush.msra.mxu0 0.0
    %446 = vmatpush.msra.mxu0 0.0
    %447 = vmatpush.msra.mxu0 0.0
    %448 = vmatpush.msra.mxu0 0.0
    %449 = vmatpush.msra.mxu0 0.0
    %450 = vmatpush.msra.mxu0 0.0
    %451 = vmatpush.msra.mxu0 0.0
    %452 = vmatpush.msra.mxu0 0.0
    %453 = vmatpush.msra.mxu0 0.0
    %454 = vmatpush.msra.mxu0 0.0
    %455 = vmatpush.msra.mxu0 0.0
    %456 = vmatpush.msra.mxu0 0.0
    %457 = vmatpush.msra.mxu0 0.0
    %458 = vmatpush.msra.mxu0 %v410
    %459 = vmatpush.msra.mxu0 %v409
    %460 = vmatmul.f32.gmra.mxu0 %v442
    %v461 = vpop.f32.mrf.mxu0
    %v462 = vadd.f32 0.0, %v461
    %463 = vdwg.mxu0
    %s464 = scalar_lea.vmem %s5, 32
    %v465 = vld [vmem:[%s464] sm:$0xff]
    %v466 = vld [vmem:[%s464 + $0x8] sm:$0xff]
    %v467 = vld [vmem:[%s464 + $0x10] sm:$0xff]
    %v468 = vld [vmem:[%s464 + $0x18] sm:$0xff]
    %v470 = vsel %vm211, %v462, 0
    %472 = vmatpush.msra.mxu0 0.0
    %473 = vmatpush.msra.mxu0 0.0
    %474 = vmatpush.msra.mxu0 0.0
    %475 = vmatpush.msra.mxu0 0.0
    %476 = vmatpush.msra.mxu0 0.0
    %477 = vmatpush.msra.mxu0 0.0
    %478 = vmatpush.msra.mxu0 0.0
    %479 = vmatpush.msra.mxu0 0.0
    %480 = vmatpush.msra.mxu0 0.0
    %481 = vmatpush.msra.mxu0 0.0
    %482 = vmatpush.msra.mxu0 0.0
    %483 = vmatpush.msra.mxu0 0.0
    %484 = vmatpush.msra.mxu0 %v468
    %485 = vmatpush.msra.mxu0 %v467
    %486 = vmatpush.msra.mxu0 %v466
    %487 = vmatpush.msra.mxu0 %v465
    %488 = vmatmul.f32.gmra.mxu0 %v470
    %v489 = vpop.f32.mrf.mxu0
    %v490 = vadd.f32 0.0, %v489
    %491 = vdwg.mxu0
    %v493 = vsel %vm211, %v433, 0
    %495 = vmatpush.msra.mxu0 0.0
    %496 = vmatpush.msra.mxu0 0.0
    %497 = vmatpush.msra.mxu0 0.0
    %498 = vmatpush.msra.mxu0 0.0
    %499 = vmatpush.msra.mxu0 0.0
    %500 = vmatpush.msra.mxu0 0.0
    %501 = vmatpush.msra.mxu0 0.0
    %502 = vmatpush.msra.mxu0 0.0
    %503 = vmatpush.msra.mxu0 0.0
    %504 = vmatpush.msra.mxu0 0.0
    %505 = vmatpush.msra.mxu0 0.0
    %506 = vmatpush.msra.mxu0 0.0
    %507 = vmatpush.msra.mxu0 %v438
    %508 = vmatpush.msra.mxu0 %v437
    %509 = vmatpush.msra.mxu0 %v436
    %510 = vmatpush.msra.mxu0 %v435
    %511 = vmatmul.f32.gmra.mxu0 %v493
    %v512 = vpop.f32.mrf.mxu0
    %v513 = vadd.f32 %v490, %v512
    %514 = vdwg.mxu0
    %s515 = scalar_lea.vmem [#allocation2], 16
    %v516 = vld [vmem:[%s515] sm:$0xff]
    %v518 = vsel %vm278, %v516, 0
    %520 = vmatpush.msra.mxu0 0.0
    %521 = vmatpush.msra.mxu0 0.0
    %522 = vmatpush.msra.mxu0 0.0
    %523 = vmatpush.msra.mxu0 0.0
    %524 = vmatpush.msra.mxu0 0.0
    %525 = vmatpush.msra.mxu0 0.0
    %526 = vmatpush.msra.mxu0 0.0
    %527 = vmatpush.msra.mxu0 0.0
    %528 = vmatpush.msra.mxu0 0.0
    %529 = vmatpush.msra.mxu0 0.0
    %530 = vmatpush.msra.mxu0 0.0
    %531 = vmatpush.msra.mxu0 0.0
    %532 = vmatpush.msra.mxu0 0.0
    %533 = vmatpush.msra.mxu0 0.0
    %534 = vmatpush.msra.mxu0 %v410
    %535 = vmatpush.msra.mxu0 %v409
    %536 = vmatmul.f32.gmra.mxu0 %v518
    %v537 = vpop.f32.mrf.mxu0
    %v538 = vadd.f32 0.0, %v537
    %539 = vdwg.mxu0
    %s540 = scalar_lea.vmem %s5, 64
    %v541 = vld [vmem:[%s540] sm:$0xff]
    %v542 = vld [vmem:[%s540 + $0x8] sm:$0xff]
    %v543 = vld [vmem:[%s540 + $0x10] sm:$0xff]
    %v544 = vld [vmem:[%s540 + $0x18] sm:$0xff]
    %v546 = vsel %vm211, %v538, 0
    %548 = vmatpush.msra.mxu0 0.0
    %549 = vmatpush.msra.mxu0 0.0
    %550 = vmatpush.msra.mxu0 0.0
    %551 = vmatpush.msra.mxu0 0.0
    %552 = vmatpush.msra.mxu0 0.0
    %553 = vmatpush.msra.mxu0 0.0
    %554 = vmatpush.msra.mxu0 0.0
    %555 = vmatpush.msra.mxu0 0.0
    %556 = vmatpush.msra.mxu0 0.0
    %557 = vmatpush.msra.mxu0 0.0
    %558 = vmatpush.msra.mxu0 0.0
    %559 = vmatpush.msra.mxu0 0.0
    %560 = vmatpush.msra.mxu0 %v544
    %561 = vmatpush.msra.mxu0 %v543
    %562 = vmatpush.msra.mxu0 %v542
    %563 = vmatpush.msra.mxu0 %v541
    %564 = vmatmul.f32.gmra.mxu0 %v546
    %v565 = vpop.f32.mrf.mxu0
    %v566 = vadd.f32 0.0, %v565
    %567 = vdwg.mxu0
    %v568 = vadd.f32 %v513, %v566
    %v569 = vld [vmem:[%s6] sm:$0x1]
    %v571 = vperm.slane %v569, 0
    %v573 = vadd.f32 %v568, %v571
    %v574 = vmax.f32 %v573, 0.0
    %v575 = vld [vmem:[%s7] sm:$0xf]
    %vm576 = vcmask 64512
    %v578 = vsel %vm576, %v575, 0
    %580 = vmatpush.msra.mxu0 0.0
    %581 = vmatpush.msra.mxu0 0.0
    %582 = vmatpush.msra.mxu0 0.0
    %583 = vmatpush.msra.mxu0 0.0
    %584 = vmatpush.msra.mxu0 0.0
    %585 = vmatpush.msra.mxu0 0.0
    %586 = vmatpush.msra.mxu0 0.0
    %587 = vmatpush.msra.mxu0 0.0
    %588 = vmatpush.msra.mxu0 0.0
    %589 = vmatpush.msra.mxu0 0.0
    %590 = vmatpush.msra.mxu0 0.0
    %591 = vmatpush.msra.mxu0 0.0
    %592 = vmatpush.msra.mxu0 0.0
    %593 = vmatpush.msra.mxu0 0.0
    %594 = vmatpush.msra.mxu0 0.0
    %595 = vmatpush.msra.mxu0 %v574
    %596 = vmatmul.f32.gmra.mxu0 %v578
    %v597 = vpop.f32.mrf.mxu0
    %v598 = vadd.f32 0.0, %v597
    %599 = vdwg.mxu0
    %v600 = vld [vmem:[%s8] sm:$0xff]
    %v601 = vld [vmem:[%s8 + $0x8] sm:$0xff]
    %s602 = scalar_lea.vmem %s7, 4
    %v603 = vld [vmem:[%s602] sm:$0xf]
    %v605 = vsel %vm576, %v603, 0
    %607 = vmatpush.msra.mxu0 0.0
    %608 = vmatpush.msra.mxu0 0.0
    %609 = vmatpush.msra.mxu0 0.0
    %610 = vmatpush.msra.mxu0 0.0
    %611 = vmatpush.msra.mxu0 0.0
    %612 = vmatpush.msra.mxu0 0.0
    %613 = vmatpush.msra.mxu0 0.0
    %614 = vmatpush.msra.mxu0 0.0
    %615 = vmatpush.msra.mxu0 0.0
    %616 = vmatpush.msra.mxu0 0.0
    %617 = vmatpush.msra.mxu0 0.0
    %618 = vmatpush.msra.mxu0 0.0
    %619 = vmatpush.msra.mxu0 0.0
    %620 = vmatpush.msra.mxu0 0.0
    %621 = vmatpush.msra.mxu0 0.0
    %622 = vmatpush.msra.mxu0 %v574
    %623 = vmatmul.f32.gmra.mxu0 %v605
    %v624 = vpop.f32.mrf.mxu0
    %v625 = vadd.f32 0.0, %v624
    %626 = vdwg.mxu0
    %s627 = scalar_lea.vmem %s8, 16
    %v628 = vld [vmem:[%s627] sm:$0xff]
    %v629 = vld [vmem:[%s627 + $0x8] sm:$0xff]
    %v631 = vsel %vm278, %v625, 0
    %633 = vmatpush.msra.mxu0 0.0
    %634 = vmatpush.msra.mxu0 0.0
    %635 = vmatpush.msra.mxu0 0.0
    %636 = vmatpush.msra.mxu0 0.0
    %637 = vmatpush.msra.mxu0 0.0
    %638 = vmatpush.msra.mxu0 0.0
    %639 = vmatpush.msra.mxu0 0.0
    %640 = vmatpush.msra.mxu0 0.0
    %641 = vmatpush.msra.mxu0 0.0
    %642 = vmatpush.msra.mxu0 0.0
    %643 = vmatpush.msra.mxu0 0.0
    %644 = vmatpush.msra.mxu0 0.0
    %645 = vmatpush.msra.mxu0 0.0
    %646 = vmatpush.msra.mxu0 0.0
    %647 = vmatpush.msra.mxu0 %v629
    %648 = vmatpush.msra.mxu0 %v628
    %649 = vmatmul.f32.gmra.mxu0 %v631
    %v650 = vpop.f32.mrf.mxu0
    %v651 = vadd.f32 0.0, %v650
    %652 = vdwg.mxu0
    %v654 = vsel %vm278, %v598, 0
    %656 = vmatpush.msra.mxu0 0.0
    %657 = vmatpush.msra.mxu0 0.0
    %658 = vmatpush.msra.mxu0 0.0
    %659 = vmatpush.msra.mxu0 0.0
    %660 = vmatpush.msra.mxu0 0.0
    %661 = vmatpush.msra.mxu0 0.0
    %662 = vmatpush.msra.mxu0 0.0
    %663 = vmatpush.msra.mxu0 0.0
    %664 = vmatpush.msra.mxu0 0.0
    %665 = vmatpush.msra.mxu0 0.0
    %666 = vmatpush.msra.mxu0 0.0
    %667 = vmatpush.msra.mxu0 0.0
    %668 = vmatpush.msra.mxu0 0.0
    %669 = vmatpush.msra.mxu0 0.0
    %670 = vmatpush.msra.mxu0 %v601
    %671 = vmatpush.msra.mxu0 %v600
    %672 = vmatmul.f32.gmra.mxu0 %v654
    %v673 = vpop.f32.mrf.mxu0
    %v674 = vadd.f32 %v651, %v673
    %675 = vdwg.mxu0
    %s676 = scalar_lea.vmem %s7, 8
    %v677 = vld [vmem:[%s676] sm:$0xf]
    %v679 = vsel %vm576, %v677, 0
    %681 = vmatpush.msra.mxu0 0.0
    %682 = vmatpush.msra.mxu0 0.0
    %683 = vmatpush.msra.mxu0 0.0
    %684 = vmatpush.msra.mxu0 0.0
    %685 = vmatpush.msra.mxu0 0.0
    %686 = vmatpush.msra.mxu0 0.0
    %687 = vmatpush.msra.mxu0 0.0
    %688 = vmatpush.msra.mxu0 0.0
    %689 = vmatpush.msra.mxu0 0.0
    %690 = vmatpush.msra.mxu0 0.0
    %691 = vmatpush.msra.mxu0 0.0
    %692 = vmatpush.msra.mxu0 0.0
    %693 = vmatpush.msra.mxu0 0.0
    %694 = vmatpush.msra.mxu0 0.0
    %695 = vmatpush.msra.mxu0 0.0
    %696 = vmatpush.msra.mxu0 %v574
    %697 = vmatmul.f32.gmra.mxu0 %v679
    %v698 = vpop.f32.mrf.mxu0
    %v699 = vadd.f32 0.0, %v698
    %700 = vdwg.mxu0
    %s701 = scalar_lea.vmem %s8, 32
    %v702 = vld [vmem:[%s701] sm:$0xff]
    %v703 = vld [vmem:[%s701 + $0x8] sm:$0xff]
    %v705 = vsel %vm278, %v699, 0
    %707 = vmatpush.msra.mxu0 0.0
    %708 = vmatpush.msra.mxu0 0.0
    %709 = vmatpush.msra.mxu0 0.0
    %710 = vmatpush.msra.mxu0 0.0
    %711 = vmatpush.msra.mxu0 0.0
    %712 = vmatpush.msra.mxu0 0.0
    %713 = vmatpush.msra.mxu0 0.0
    %714 = vmatpush.msra.mxu0 0.0
    %715 = vmatpush.msra.mxu0 0.0
    %716 = vmatpush.msra.mxu0 0.0
    %717 = vmatpush.msra.mxu0 0.0
    %718 = vmatpush.msra.mxu0 0.0
    %719 = vmatpush.msra.mxu0 0.0
    %720 = vmatpush.msra.mxu0 0.0
    %721 = vmatpush.msra.mxu0 %v703
    %722 = vmatpush.msra.mxu0 %v702
    %723 = vmatmul.f32.gmra.mxu0 %v705
    %v724 = vpop.f32.mrf.mxu0
    %v725 = vadd.f32 0.0, %v724
    %726 = vdwg.mxu0
    %v727 = vadd.f32 %v674, %v725
    %v728 = vld [vmem:[%s9] sm:$0x1]
    %v730 = vperm.slane %v728, 0
    %v732 = vadd.f32 %v727, %v730
    %v733 = vmax.f32 %v732, 0.0
    %v734 = vld [vmem:[#allocation5] sm:$0xff]
    %v735 = vld [vmem:[#allocation5 + $0x8] sm:$0xff]
    %v736 = vld [vmem:[#allocation7] sm:$0x1]
    %v738 = vperm.slane %v736, 0
    %v741 = vsel %vm278, %v733, 0
    %743 = vmatpush.msra.mxu0 0.0
    %744 = vmatpush.msra.mxu0 0.0
    %745 = vmatpush.msra.mxu0 0.0
    %746 = vmatpush.msra.mxu0 0.0
    %747 = vmatpush.msra.mxu0 0.0
    %748 = vmatpush.msra.mxu0 0.0
    %749 = vmatpush.msra.mxu0 0.0
    %750 = vmatpush.msra.mxu0 0.0
    %751 = vmatpush.msra.mxu0 0.0
    %752 = vmatpush.msra.mxu0 0.0
    %753 = vmatpush.msra.mxu0 0.0
    %754 = vmatpush.msra.mxu0 0.0
    %755 = vmatpush.msra.mxu0 0.0
    %756 = vmatpush.msra.mxu0 0.0
    %757 = vmatpush.msra.mxu0 %v735
    %758 = vmatpush.msra.mxu0 %v734
    %759 = vmatmul.f32.gmra.mxu0 %v741
    %v760 = vpop.f32.mrf.mxu0
    %v761 = vadd.f32 %v738, %v760
    %762 = vdwg.mxu0
    %v763 = vld [vmem:[%s12] sm:$0xff]
    %v764 = vld [vmem:[%s12 + $0x8] sm:$0xff]
    %v765 = vld [vmem:[%s12 + $0x10] sm:$0xff]
    %v766 = vld [vmem:[%s12 + $0x18] sm:$0xff]
    %v767 = vld [vmem:[#allocation8] sm:$0x1]
    %v769 = vperm.slane %v767, 0
    %v772 = vsel %vm211, 0.0, 0
    %774 = vmatpush.msra.mxu0 0.0
    %775 = vmatpush.msra.mxu0 0.0
    %776 = vmatpush.msra.mxu0 0.0
    %777 = vmatpush.msra.mxu0 0.0
    %778 = vmatpush.msra.mxu0 0.0
    %779 = vmatpush.msra.mxu0 0.0
    %780 = vmatpush.msra.mxu0 0.0
    %781 = vmatpush.msra.mxu0 0.0
    %782 = vmatpush.msra.mxu0 0.0
    %783 = vmatpush.msra.mxu0 0.0
    %784 = vmatpush.msra.mxu0 0.0
    %785 = vmatpush.msra.mxu0 0.0
    %786 = vmatpush.msra.mxu0 %v766
    %787 = vmatpush.msra.mxu0 %v765
    %788 = vmatpush.msra.mxu0 %v764
    %789 = vmatpush.msra.mxu0 %v763
    %790 = vmatmul.f32.gmra.mxu0 %v772
    %v791 = vpop.f32.mrf.mxu0
    %v792 = vadd.f32 %v769, %v791
    %793 = vdwg.mxu0
    %v794 = vadd.f32 %v761, %v792
    %v795 = vxor.u32 %v794, 2147483648
    %v796 = vmul.f32 %v795, 1.442695
    %v797 = vpow.pop %v796
    %v798 = vadd.f32 %v797, 1.0
    %v799 = vrcp.pop %v798
    %v800 = vmul.f32 %v798, %v799
    %v801 = vsub.f32 1.0, %v800
    %v802 = vmul.f32 %v799, %v801
    %v803 = vadd.f32 %v799, %v802
    %vm804 = vweird.f32 %v798
    %vm805 = vweird.f32 %v799
    %vm806 = vmor %vm804, %vm805
    %v807 = vsel %vm806, %v799, %v803
    %v808 = vand.u32 2147483647, %v798
    %vm809 = vcmp.eq.f32.partialorder %v808, 8.507059e+37
    %v810 = vand.u32 %v798, 2147483648
    %v811 = vor.u32 1.1754944e-38, %v810
    %v812 = vsel %vm809, %v811, %v807
    %v813 = vmul.f32 1.0, %v812
    %815 = vrot.lane.b32.xlu0 %v792, 64
    %v816 = vpop.permute.xlu0 %815
    %v818 = vmul.f32 %v813, %v816
    %820 = vrot.lane.b32.xlu0 %v818, 64
    %v821 = vpop.permute.xlu0 %820
    %v823 = vadd.f32 %v761, %v821
    %v824 = vtanh.pop %v823
    %v825 = vsub.f32 1.0, %v813
    %827 = vrot.lane.b32.xlu0 %v824, 96
    %v828 = vpop.permute.xlu0 %827
    %v830 = vmul.f32 %v825, %v828
    %v831 = vmul.f32 %v813, 0.0
    %v832 = vadd.f32 %v830, %v831
    %834 = vrot.lane.b32.xlu0 %v832, 96
    %v835 = vpop.permute.xlu0 %834
    %v836 = vsel %vm211, %v835, 0
    %838 = vmatpush.msra.mxu0 0.0
    %839 = vmatpush.msra.mxu0 0.0
    %840 = vmatpush.msra.mxu0 0.0
    %841 = vmatpush.msra.mxu0 0.0
    %842 = vmatpush.msra.mxu0 0.0
    %843 = vmatpush.msra.mxu0 0.0
    %844 = vmatpush.msra.mxu0 0.0
    %845 = vmatpush.msra.mxu0 0.0
    %846 = vmatpush.msra.mxu0 0.0
    %847 = vmatpush.msra.mxu0 0.0
    %848 = vmatpush.msra.mxu0 0.0
    %849 = vmatpush.msra.mxu0 0.0
    %850 = vmatpush.msra.mxu0 %v766
    %851 = vmatpush.msra.mxu0 %v765
    %852 = vmatpush.msra.mxu0 %v764
    %853 = vmatpush.msra.mxu0 %v763
    %854 = vmatmul.f32.gmra.mxu0 %v836
    %v855 = vpop.f32.mrf.mxu0
    %v856 = vadd.f32 %v769, %v855
    %857 = vdwg.mxu0
    %v859 = vrot.slane %v856, 6
    %v861 = vadd.f32 %v761, %v859
    %v862 = vxor.u32 %v861, 2147483648
    %v863 = vmul.f32 %v862, 1.442695
    %v864 = vpow.pop %v863
    %v865 = vadd.f32 %v864, 1.0
    %v866 = vrcp.pop %v865
    %v867 = vmul.f32 %v865, %v866
    %v868 = vsub.f32 1.0, %v867
    %v869 = vmul.f32 %v866, %v868
    %v870 = vadd.f32 %v866, %v869
    %vm871 = vweird.f32 %v865
    %vm872 = vweird.f32 %v866
    %vm873 = vmor %vm871, %vm872
    %v874 = vsel %vm873, %v866, %v870
    %v875 = vand.u32 2147483647, %v865
    %vm876 = vcmp.eq.f32.partialorder %v875, 8.507059e+37
    %v877 = vand.u32 %v865, 2147483648
    %v878 = vor.u32 1.1754944e-38, %v877
    %v879 = vsel %vm876, %v878, %v874
    %v880 = vmul.f32 1.0, %v879
    %881 = vrot.lane.b32.xlu0 %v859, 64
    %v882 = vpop.permute.xlu0 %881
    %v884 = vmul.f32 %v880, %v882
    %886 = vrot.lane.b32.xlu0 %v884, 64
    %v887 = vpop.permute.xlu0 %886
    %v889 = vadd.f32 %v761, %v887
    %v890 = vtanh.pop %v889
    %v891 = vsub.f32 1.0, %v880
    %893 = vrot.lane.b32.xlu0 %v890, 96
    %v894 = vpop.permute.xlu0 %893
    %v896 = vmul.f32 %v891, %v894
    %v897 = vrot.slane %v832, 6
    %v899 = vmul.f32 %v880, %v897
    %v900 = vadd.f32 %v896, %v899
    %v901 = vld [vmem:[%s14] sm:$0xff]
    %v902 = vld [vmem:[%s14 + $0x8] sm:$0x3]
    %v903 = vtanh.pop %v901
    %v904 = vtanh.pop %v902
    %v905 = vld [vmem:[#allocation10] sm:$0xff]
    %v906 = vld [vmem:[#allocation10 + $0x8] sm:$0xff]
    %v907 = vld [vmem:[#allocation10 + $0x10] sm:$0xff]
    %v908 = vld [vmem:[#allocation10 + $0x18] sm:$0xff]
    %v909 = vld [vmem:[#allocation11] sm:$0x1]
    %v911 = vperm.slane %v909, 0
    %v914 = vrot.slane %v900, 2
    %915 = vrot.lane.b32.xlu0 %v914, 96
    %v916 = vpop.permute.xlu0 %915
    %v917 = vsel %vm211, %v916, 0
    %919 = vmatpush.msra.mxu0 0.0
    %920 = vmatpush.msra.mxu0 0.0
    %921 = vmatpush.msra.mxu0 0.0
    %922 = vmatpush.msra.mxu0 0.0
    %923 = vmatpush.msra.mxu0 0.0
    %924 = vmatpush.msra.mxu0 0.0
    %925 = vmatpush.msra.mxu0 0.0
    %926 = vmatpush.msra.mxu0 0.0
    %927 = vmatpush.msra.mxu0 0.0
    %928 = vmatpush.msra.mxu0 0.0
    %929 = vmatpush.msra.mxu0 0.0
    %930 = vmatpush.msra.mxu0 0.0
    %931 = vmatpush.msra.mxu0 %v908
    %932 = vmatpush.msra.mxu0 %v907
    %933 = vmatpush.msra.mxu0 %v906
    %934 = vmatpush.msra.mxu0 %v905
    %935 = vmatmul.f32.gmra.mxu0 %v917
    %v936 = vpop.f32.mrf.mxu0
    %v937 = vadd.f32 %v911, %v936
    %938 = vdwg.mxu0
    %v939 = vld [vmem:[#allocation13] sm:$0xff]
    %v940 = vld [vmem:[%s18] sm:$0x1]
    %v942 = vperm.slane %v940, 0
    %v945 = vsel %vm576, %v903, 0
    %v948 = vsel %vm576, %v904, 0
    %950 = vmatpush.msra.mxu0 0.0
    %951 = vmatpush.msra.mxu0 0.0
    %952 = vmatpush.msra.mxu0 0.0
    %953 = vmatpush.msra.mxu0 0.0
    %954 = vmatpush.msra.mxu0 0.0
    %955 = vmatpush.msra.mxu0 0.0
    %956 = vmatpush.msra.mxu0 0.0
    %957 = vmatpush.msra.mxu0 0.0
    %958 = vmatpush.msra.mxu0 0.0
    %959 = vmatpush.msra.mxu0 0.0
    %960 = vmatpush.msra.mxu0 0.0
    %961 = vmatpush.msra.mxu0 0.0
    %962 = vmatpush.msra.mxu0 0.0
    %963 = vmatpush.msra.mxu0 0.0
    %964 = vmatpush.msra.mxu0 0.0
    %965 = vmatpush.msra.mxu0 %v939
    %966 = vmatmul.f32.gmra.mxu0 %v945
    %v967 = vpop.f32.mrf.mxu0
    %v968 = vadd.f32 %v942, %v967
    %969 = vmatmul.f32.gmra.mxu0 %v948
    %v970 = vpop.f32.mrf.mxu0
    %v971 = vadd.f32 %v942, %v970
    %972 = vdwg.mxu0
    %v973 = vld [vmem:[#allocation14] sm:$0xff]
    %v974 = vld [vmem:[%s20] sm:$0x1]
    %v976 = vperm.slane %v974, 0
    %978 = vmatpush.msra.mxu0 0.0
    %979 = vmatpush.msra.mxu0 0.0
    %980 = vmatpush.msra.mxu0 0.0
    %981 = vmatpush.msra.mxu0 0.0
    %982 = vmatpush.msra.mxu0 0.0
    %983 = vmatpush.msra.mxu0 0.0
    %984 = vmatpush.msra.mxu0 0.0
    %985 = vmatpush.msra.mxu0 0.0
    %986 = vmatpush.msra.mxu0 0.0
    %987 = vmatpush.msra.mxu0 0.0
    %988 = vmatpush.msra.mxu0 0.0
    %989 = vmatpush.msra.mxu0 0.0
    %990 = vmatpush.msra.mxu0 0.0
    %991 = vmatpush.msra.mxu0 0.0
    %992 = vmatpush.msra.mxu0 0.0
    %993 = vmatpush.msra.mxu0 %v973
    %994 = vmatmul.f32.gmra.mxu0 %v945
    %v995 = vpop.f32.mrf.mxu0
    %v996 = vadd.f32 %v976, %v995
    %997 = vmatmul.f32.gmra.mxu0 %v948
    %v998 = vpop.f32.mrf.mxu0
    %v999 = vadd.f32 %v976, %v998
    %1000 = vdwg.mxu0
    %v1001 = vld [vmem:[#allocation16] sm:$0xff]
    %v1002 = vld [vmem:[#allocation16 + $0x8] sm:$0xff]
    %v1003 = vld [vmem:[#allocation16 + $0x10] sm:$0xff]
    %v1004 = vld [vmem:[#allocation16 + $0x18] sm:$0xff]
    %v1006 = vsel %vm576, %v937, 0
    %v1009 = vsel %vm576, %v968, 0
    %v1012 = vsel %vm576, %v971, 0
    %1014 = vmatpush.xpose.msra.mxu0 0.0
    %1015 = vmatpush.xpose.msra.mxu0 0.0
    %1016 = vmatpush.xpose.msra.mxu0 0.0
    %1017 = vmatpush.xpose.msra.mxu0 0.0
    %1018 = vmatpush.xpose.msra.mxu0 0.0
    %1019 = vmatpush.xpose.msra.mxu0 0.0
    %1020 = vmatpush.xpose.msra.mxu0 0.0
    %1021 = vmatpush.xpose.msra.mxu0 0.0
    %1022 = vmatpush.xpose.msra.mxu0 0.0
    %1023 = vmatpush.xpose.msra.mxu0 0.0
    %1024 = vmatpush.xpose.msra.mxu0 0.0
    %1025 = vmatpush.xpose.msra.mxu0 0.0
    %1026 = vmatpush.xpose.msra.mxu0 0.0
    %1027 = vmatpush.xpose.msra.mxu0 0.0
    %1028 = vmatpush.xpose.msra.mxu0 %v1012
    %1029 = vmatpush.xpose.msra.mxu0 %v1009
    %1030 = vmatmul.f32.gmra.mxu0 %v1006
    %v1031 = vpop.f32.mrf.mxu0
    %v1032 = vadd.f32 0.0, %v1031
    %1033 = vdwg.mxu0
    %v1034 = vmul.f32 %v1032, 0.17677669
    %vm1035 = vcmask 74752
    %v1036 = vsel %vm1035, %v1034, -inf
    %1037 = vmax.xlane.f32.xlu0 %v1036
    %v1038 = vpop.xlane.xlu0 %1037
    %v1039 = vsub.f32 %v1034, %v1038
    %v1040 = vmul.f32 %v1039, 1.442695
    %v1041 = vpow.pop %v1040
    %v1042 = vsel %vm1035, %v1041, 0.0
    %1043 = vadd.xlane.f32.xlu0 %v1042
    %v1044 = vpop.xlane.xlu0 %1043
    %v1045 = vrcp.pop %v1044
    %v1046 = vmul.f32 %v1044, %v1045
    %v1047 = vsub.f32 1.0, %v1046
    %v1048 = vmul.f32 %v1045, %v1047
    %v1049 = vadd.f32 %v1045, %v1048
    %vm1050 = vweird.f32 %v1044
    %vm1051 = vweird.f32 %v1045
    %vm1052 = vmor %vm1050, %vm1051
    %v1053 = vsel %vm1052, %v1045, %v1049
    %v1054 = vand.u32 2147483647, %v1044
    %vm1055 = vcmp.eq.f32.partialorder %v1054, 8.507059e+37
    %v1056 = vand.u32 %v1044, 2147483648
    %v1057 = vor.u32 1.1754944e-38, %v1056
    %v1058 = vsel %vm1055, %v1057, %v1053
    %v1059 = vmul.f32 %v1041, %v1058
    %vm1060 = vcmask 80896
    %v1062 = vsel %vm1060, %v1059, 0
    %vm1064 = vcmask 1041408
    %v1066 = vsel %vm1064, %v999, 0
    %1068 = vmatpush.msra.mxu0 0.0
    %1069 = vmatpush.msra.mxu0 0.0
    %1070 = vmatpush.msra.mxu0 0.0
    %1071 = vmatpush.msra.mxu0 0.0
    %1072 = vmatpush.msra.mxu0 0.0
    %1073 = vmatpush.msra.mxu0 0.0
    %1074 = vmatpush.msra.mxu0 0.0
    %1075 = vmatpush.msra.mxu0 0.0
    %1076 = vmatpush.msra.mxu0 0.0
    %1077 = vmatpush.msra.mxu0 0.0
    %1078 = vmatpush.msra.mxu0 0.0
    %1079 = vmatpush.msra.mxu0 0.0
    %1080 = vmatpush.msra.mxu0 0.0
    %1081 = vmatpush.msra.mxu0 0.0
    %1082 = vmatpush.msra.mxu0 %v1066
    %1083 = vmatpush.msra.mxu0 %v996
    %1084 = vmatmul.f32.gmra.mxu0 %v1062
    %v1085 = vpop.f32.mrf.mxu0
    %v1086 = vadd.f32 0.0, %v1085
    %1087 = vdwg.mxu0
    %1088 = vrot.lane.b32.xlu0 %v937, 120
    %v1089 = vpop.permute.xlu0 %1088
    %1090 = vrot.lane.b32.xlu0 %v968, 120
    %v1091 = vpop.permute.xlu0 %1090
    %1092 = vrot.lane.b32.xlu0 %v971, 120
    %v1093 = vpop.permute.xlu0 %1092
    %v1094 = vsel %vm576, %v1089, 0
    %v1096 = vsel %vm576, %v1091, 0
    %v1098 = vsel %vm576, %v1093, 0
    %1100 = vmatpush.xpose.msra.mxu0 0.0
    %1101 = vmatpush.xpose.msra.mxu0 0.0
    %1102 = vmatpush.xpose.msra.mxu0 0.0
    %1103 = vmatpush.xpose.msra.mxu0 0.0
    %1104 = vmatpush.xpose.msra.mxu0 0.0
    %1105 = vmatpush.xpose.msra.mxu0 0.0
    %1106 = vmatpush.xpose.msra.mxu0 0.0
    %1107 = vmatpush.xpose.msra.mxu0 0.0
    %1108 = vmatpush.xpose.msra.mxu0 0.0
    %1109 = vmatpush.xpose.msra.mxu0 0.0
    %1110 = vmatpush.xpose.msra.mxu0 0.0
    %1111 = vmatpush.xpose.msra.mxu0 0.0
    %1112 = vmatpush.xpose.msra.mxu0 0.0
    %1113 = vmatpush.xpose.msra.mxu0 0.0
    %1114 = vmatpush.xpose.msra.mxu0 %v1098
    %1115 = vmatpush.xpose.msra.mxu0 %v1096
    %1116 = vmatmul.f32.gmra.mxu0 %v1094
    %v1117 = vpop.f32.mrf.mxu0
    %v1118 = vadd.f32 0.0, %v1117
    %1119 = vdwg.mxu0
    %v1120 = vmul.f32 %v1118, 0.17677669
    %v1121 = vsel %vm1035, %v1120, -inf
    %1122 = vmax.xlane.f32.xlu0 %v1121
    %v1123 = vpop.xlane.xlu0 %1122
    %v1124 = vsub.f32 %v1120, %v1123
    %v1125 = vmul.f32 %v1124, 1.442695
    %v1126 = vpow.pop %v1125
    %v1127 = vsel %vm1035, %v1126, 0.0
    %1128 = vadd.xlane.f32.xlu0 %v1127
    %v1129 = vpop.xlane.xlu0 %1128
    %v1130 = vrcp.pop %v1129
    %v1131 = vmul.f32 %v1129, %v1130
    %v1132 = vsub.f32 1.0, %v1131
    %v1133 = vmul.f32 %v1130, %v1132
    %v1134 = vadd.f32 %v1130, %v1133
    %vm1135 = vweird.f32 %v1129
    %vm1136 = vweird.f32 %v1130
    %vm1137 = vmor %vm1135, %vm1136
    %v1138 = vsel %vm1137, %v1130, %v1134
    %v1139 = vand.u32 2147483647, %v1129
    %vm1140 = vcmp.eq.f32.partialorder %v1139, 8.507059e+37
    %v1141 = vand.u32 %v1129, 2147483648
    %v1142 = vor.u32 1.1754944e-38, %v1141
    %v1143 = vsel %vm1140, %v1142, %v1138
    %v1144 = vmul.f32 %v1126, %v1143
    %1146 = vrot.lane.b32.xlu0 %v996, 120
    %v1147 = vpop.permute.xlu0 %1146
    %1148 = vrot.lane.b32.xlu0 %v999, 120
    %v1149 = vpop.permute.xlu0 %1148
    %v1152 = vsel %vm1060, %v1144, 0
    %v1154 = vsel %vm1064, %v1149, 0
    %1156 = vmatpush.msra.mxu0 0.0
    %1157 = vmatpush.msra.mxu0 0.0
    %1158 = vmatpush.msra.mxu0 0.0
    %1159 = vmatpush.msra.mxu0 0.0
    %1160 = vmatpush.msra.mxu0 0.0
    %1161 = vmatpush.msra.mxu0 0.0
    %1162 = vmatpush.msra.mxu0 0.0
    %1163 = vmatpush.msra.mxu0 0.0
    %1164 = vmatpush.msra.mxu0 0.0
    %1165 = vmatpush.msra.mxu0 0.0
    %1166 = vmatpush.msra.mxu0 0.0
    %1167 = vmatpush.msra.mxu0 0.0
    %1168 = vmatpush.msra.mxu0 0.0
    %1169 = vmatpush.msra.mxu0 0.0
    %1170 = vmatpush.msra.mxu0 %v1154
    %1171 = vmatpush.msra.mxu0 %v1147
    %1172 = vmatmul.f32.gmra.mxu0 %v1152
    %v1173 = vpop.f32.mrf.mxu0
    %v1174 = vadd.f32 0.0, %v1173
    %1175 = vdwg.mxu0
    %v1177 = vsel %vm576, %v1174, 0
    %1179 = vmatpush.msra.mxu0 0.0
    %1180 = vmatpush.msra.mxu0 0.0
    %1181 = vmatpush.msra.mxu0 0.0
    %1182 = vmatpush.msra.mxu0 0.0
    %1183 = vmatpush.msra.mxu0 0.0
    %1184 = vmatpush.msra.mxu0 0.0
    %1185 = vmatpush.msra.mxu0 0.0
    %1186 = vmatpush.msra.mxu0 0.0
    %1187 = vmatpush.msra.mxu0 0.0
    %1188 = vmatpush.msra.mxu0 0.0
    %1189 = vmatpush.msra.mxu0 0.0
    %1190 = vmatpush.msra.mxu0 0.0
    %1191 = vmatpush.msra.mxu0 0.0
    %1192 = vmatpush.msra.mxu0 0.0
    %1193 = vmatpush.msra.mxu0 0.0
    %1194 = vmatpush.msra.mxu0 %v1002
    %1195 = vmatmul.f32.gmra.mxu0 %v1177
    %v1196 = vpop.f32.mrf.mxu0
    %v1197 = vadd.f32 0.0, %v1196
    %1198 = vdwg.mxu0
    %v1200 = vsel %vm576, %v1086, 0
    %1202 = vmatpush.msra.mxu0 0.0
    %1203 = vmatpush.msra.mxu0 0.0
    %1204 = vmatpush.msra.mxu0 0.0
    %1205 = vmatpush.msra.mxu0 0.0
    %1206 = vmatpush.msra.mxu0 0.0
    %1207 = vmatpush.msra.mxu0 0.0
    %1208 = vmatpush.msra.mxu0 0.0
    %1209 = vmatpush.msra.mxu0 0.0
    %1210 = vmatpush.msra.mxu0 0.0
    %1211 = vmatpush.msra.mxu0 0.0
    %1212 = vmatpush.msra.mxu0 0.0
    %1213 = vmatpush.msra.mxu0 0.0
    %1214 = vmatpush.msra.mxu0 0.0
    %1215 = vmatpush.msra.mxu0 0.0
    %1216 = vmatpush.msra.mxu0 0.0
    %1217 = vmatpush.msra.mxu0 %v1001
    %1218 = vmatmul.f32.gmra.mxu0 %v1200
    %v1219 = vpop.f32.mrf.mxu0
    %v1220 = vadd.f32 %v1197, %v1219
    %1221 = vdwg.mxu0
    %1222 = vrot.lane.b32.xlu0 %v937, 112
    %v1223 = vpop.permute.xlu0 %1222
    %1224 = vrot.lane.b32.xlu0 %v968, 112
    %v1225 = vpop.permute.xlu0 %1224
    %1226 = vrot.lane.b32.xlu0 %v971, 112
    %v1227 = vpop.permute.xlu0 %1226
    %v1228 = vsel %vm576, %v1223, 0
    %v1230 = vsel %vm576, %v1225, 0
    %v1232 = vsel %vm576, %v1227, 0
    %1234 = vmatpush.xpose.msra.mxu0 0.0
    %1235 = vmatpush.xpose.msra.mxu0 0.0
    %1236 = vmatpush.xpose.msra.mxu0 0.0
    %1237 = vmatpush.xpose.msra.mxu0 0.0
    %1238 = vmatpush.xpose.msra.mxu0 0.0
    %1239 = vmatpush.xpose.msra.mxu0 0.0
    %1240 = vmatpush.xpose.msra.mxu0 0.0
    %1241 = vmatpush.xpose.msra.mxu0 0.0
    %1242 = vmatpush.xpose.msra.mxu0 0.0
    %1243 = vmatpush.xpose.msra.mxu0 0.0
    %1244 = vmatpush.xpose.msra.mxu0 0.0
    %1245 = vmatpush.xpose.msra.mxu0 0.0
    %1246 = vmatpush.xpose.msra.mxu0 0.0
    %1247 = vmatpush.xpose.msra.mxu0 0.0
    %1248 = vmatpush.xpose.msra.mxu0 %v1232
    %1249 = vmatpush.xpose.msra.mxu0 %v1230
    %1250 = vmatmul.f32.gmra.mxu0 %v1228
    %v1251 = vpop.f32.mrf.mxu0
    %v1252 = vadd.f32 0.0, %v1251
    %1253 = vdwg.mxu0
    %v1254 = vmul.f32 %v1252, 0.17677669
    %v1255 = vsel %vm1035, %v1254, -inf
    %1256 = vmax.xlane.f32.xlu0 %v1255
    %v1257 = vpop.xlane.xlu0 %1256
    %v1258 = vsub.f32 %v1254, %v1257
    %v1259 = vmul.f32 %v1258, 1.442695
    %v1260 = vpow.pop %v1259
    %v1261 = vsel %vm1035, %v1260, 0.0
    %1262 = vadd.xlane.f32.xlu0 %v1261
    %v1263 = vpop.xlane.xlu0 %1262
    %v1264 = vrcp.pop %v1263
    %v1265 = vmul.f32 %v1263, %v1264
    %v1266 = vsub.f32 1.0, %v1265
    %v1267 = vmul.f32 %v1264, %v1266
    %v1268 = vadd.f32 %v1264, %v1267
    %vm1269 = vweird.f32 %v1263
    %vm1270 = vweird.f32 %v1264
    %vm1271 = vmor %vm1269, %vm1270
    %v1272 = vsel %vm1271, %v1264, %v1268
    %v1273 = vand.u32 2147483647, %v1263
    %vm1274 = vcmp.eq.f32.partialorder %v1273, 8.507059e+37
    %v1275 = vand.u32 %v1263, 2147483648
    %v1276 = vor.u32 1.1754944e-38, %v1275
    %v1277 = vsel %vm1274, %v1276, %v1272
    %v1278 = vmul.f32 %v1260, %v1277
    %1279 = vrot.lane.b32.xlu0 %v996, 112
    %v1280 = vpop.permute.xlu0 %1279
    %1281 = vrot.lane.b32.xlu0 %v999, 112
    %v1282 = vpop.permute.xlu0 %1281
    %v1285 = vsel %vm1060, %v1278, 0
    %v1287 = vsel %vm1064, %v1282, 0
    %1289 = vmatpush.msra.mxu0 0.0
    %1290 = vmatpush.msra.mxu0 0.0
    %1291 = vmatpush.msra.mxu0 0.0
    %1292 = vmatpush.msra.mxu0 0.0
    %1293 = vmatpush.msra.mxu0 0.0
    %1294 = vmatpush.msra.mxu0 0.0
    %1295 = vmatpush.msra.mxu0 0.0
    %1296 = vmatpush.msra.mxu0 0.0
    %1297 = vmatpush.msra.mxu0 0.0
    %1298 = vmatpush.msra.mxu0 0.0
    %1299 = vmatpush.msra.mxu0 0.0
    %1300 = vmatpush.msra.mxu0 0.0
    %1301 = vmatpush.msra.mxu0 0.0
    %1302 = vmatpush.msra.mxu0 0.0
    %1303 = vmatpush.msra.mxu0 %v1287
    %1304 = vmatpush.msra.mxu0 %v1280
    %1305 = vmatmul.f32.gmra.mxu0 %v1285
    %v1306 = vpop.f32.mrf.mxu0
    %v1307 = vadd.f32 0.0, %v1306
    %1308 = vdwg.mxu0
    %v1310 = vsel %vm576, %v1307, 0
    %1312 = vmatpush.msra.mxu0 0.0
    %1313 = vmatpush.msra.mxu0 0.0
    %1314 = vmatpush.msra.mxu0 0.0
    %1315 = vmatpush.msra.mxu0 0.0
    %1316 = vmatpush.msra.mxu0 0.0
    %1317 = vmatpush.msra.mxu0 0.0
    %1318 = vmatpush.msra.mxu0 0.0
    %1319 = vmatpush.msra.mxu0 0.0
    %1320 = vmatpush.msra.mxu0 0.0
    %1321 = vmatpush.msra.mxu0 0.0
    %1322 = vmatpush.msra.mxu0 0.0
    %1323 = vmatpush.msra.mxu0 0.0
    %1324 = vmatpush.msra.mxu0 0.0
    %1325 = vmatpush.msra.mxu0 0.0
    %1326 = vmatpush.msra.mxu0 0.0
    %1327 = vmatpush.msra.mxu0 %v1003
    %1328 = vmatmul.f32.gmra.mxu0 %v1310
    %v1329 = vpop.f32.mrf.mxu0
    %v1330 = vadd.f32 0.0, %v1329
    %1331 = vdwg.mxu0
    %v1332 = vadd.f32 %v1220, %v1330
    %1333 = vrot.lane.b32.xlu0 %v937, 104
    %v1334 = vpop.permute.xlu0 %1333
    %1335 = vrot.lane.b32.xlu0 %v968, 104
    %v1336 = vpop.permute.xlu0 %1335
    %1337 = vrot.lane.b32.xlu0 %v971, 104
    %v1338 = vpop.permute.xlu0 %1337
    %v1339 = vsel %vm576, %v1334, 0
    %v1341 = vsel %vm576, %v1336, 0
    %v1343 = vsel %vm576, %v1338, 0
    %1345 = vmatpush.xpose.msra.mxu0 0.0
    %1346 = vmatpush.xpose.msra.mxu0 0.0
    %1347 = vmatpush.xpose.msra.mxu0 0.0
    %1348 = vmatpush.xpose.msra.mxu0 0.0
    %1349 = vmatpush.xpose.msra.mxu0 0.0
    %1350 = vmatpush.xpose.msra.mxu0 0.0
    %1351 = vmatpush.xpose.msra.mxu0 0.0
    %1352 = vmatpush.xpose.msra.mxu0 0.0
    %1353 = vmatpush.xpose.msra.mxu0 0.0
    %1354 = vmatpush.xpose.msra.mxu0 0.0
    %1355 = vmatpush.xpose.msra.mxu0 0.0
    %1356 = vmatpush.xpose.msra.mxu0 0.0
    %1357 = vmatpush.xpose.msra.mxu0 0.0
    %1358 = vmatpush.xpose.msra.mxu0 0.0
    %1359 = vmatpush.xpose.msra.mxu0 %v1343
    %1360 = vmatpush.xpose.msra.mxu0 %v1341
    %1361 = vmatmul.f32.gmra.mxu0 %v1339
    %v1362 = vpop.f32.mrf.mxu0
    %v1363 = vadd.f32 0.0, %v1362
    %1364 = vdwg.mxu0
    %v1365 = vmul.f32 %v1363, 0.17677669
    %v1366 = vsel %vm1035, %v1365, -inf
    %1367 = vmax.xlane.f32.xlu0 %v1366
    %v1368 = vpop.xlane.xlu0 %1367
    %v1369 = vsub.f32 %v1365, %v1368
    %v1370 = vmul.f32 %v1369, 1.442695
    %v1371 = vpow.pop %v1370
    %v1372 = vsel %vm1035, %v1371, 0.0
    %1373 = vadd.xlane.f32.xlu0 %v1372
    %v1374 = vpop.xlane.xlu0 %1373
    %v1375 = vrcp.pop %v1374
    %v1376 = vmul.f32 %v1374, %v1375
    %v1377 = vsub.f32 1.0, %v1376
    %v1378 = vmul.f32 %v1375, %v1377
    %v1379 = vadd.f32 %v1375, %v1378
    %vm1380 = vweird.f32 %v1374
    %vm1381 = vweird.f32 %v1375
    %vm1382 = vmor %vm1380, %vm1381
    %v1383 = vsel %vm1382, %v1375, %v1379
    %v1384 = vand.u32 2147483647, %v1374
    %vm1385 = vcmp.eq.f32.partialorder %v1384, 8.507059e+37
    %v1386 = vand.u32 %v1374, 2147483648
    %v1387 = vor.u32 1.1754944e-38, %v1386
    %v1388 = vsel %vm1385, %v1387, %v1383
    %v1389 = vmul.f32 %v1371, %v1388
    %1390 = vrot.lane.b32.xlu0 %v996, 104
    %v1391 = vpop.permute.xlu0 %1390
    %1392 = vrot.lane.b32.xlu0 %v999, 104
    %v1393 = vpop.permute.xlu0 %1392
    %v1396 = vsel %vm1060, %v1389, 0
    %v1398 = vsel %vm1064, %v1393, 0
    %1400 = vmatpush.msra.mxu0 0.0
    %1401 = vmatpush.msra.mxu0 0.0
    %1402 = vmatpush.msra.mxu0 0.0
    %1403 = vmatpush.msra.mxu0 0.0
    %1404 = vmatpush.msra.mxu0 0.0
    %1405 = vmatpush.msra.mxu0 0.0
    %1406 = vmatpush.msra.mxu0 0.0
    %1407 = vmatpush.msra.mxu0 0.0
    %1408 = vmatpush.msra.mxu0 0.0
    %1409 = vmatpush.msra.mxu0 0.0
    %1410 = vmatpush.msra.mxu0 0.0
    %1411 = vmatpush.msra.mxu0 0.0
    %1412 = vmatpush.msra.mxu0 0.0
    %1413 = vmatpush.msra.mxu0 0.0
    %1414 = vmatpush.msra.mxu0 %v1398
    %1415 = vmatpush.msra.mxu0 %v1391
    %1416 = vmatmul.f32.gmra.mxu0 %v1396
    %v1417 = vpop.f32.mrf.mxu0
    %v1418 = vadd.f32 0.0, %v1417
    %1419 = vdwg.mxu0
    %v1421 = vsel %vm576, %v1418, 0
    %1423 = vmatpush.msra.mxu0 0.0
    %1424 = vmatpush.msra.mxu0 0.0
    %1425 = vmatpush.msra.mxu0 0.0
    %1426 = vmatpush.msra.mxu0 0.0
    %1427 = vmatpush.msra.mxu0 0.0
    %1428 = vmatpush.msra.mxu0 0.0
    %1429 = vmatpush.msra.mxu0 0.0
    %1430 = vmatpush.msra.mxu0 0.0
    %1431 = vmatpush.msra.mxu0 0.0
    %1432 = vmatpush.msra.mxu0 0.0
    %1433 = vmatpush.msra.mxu0 0.0
    %1434 = vmatpush.msra.mxu0 0.0
    %1435 = vmatpush.msra.mxu0 0.0
    %1436 = vmatpush.msra.mxu0 0.0
    %1437 = vmatpush.msra.mxu0 0.0
    %1438 = vmatpush.msra.mxu0 %v1004
    %1439 = vmatmul.f32.gmra.mxu0 %v1421
    %v1440 = vpop.f32.mrf.mxu0
    %v1441 = vadd.f32 0.0, %v1440
    %1442 = vdwg.mxu0
    %v1443 = vadd.f32 %v1332, %v1441
    %v1444 = vld [vmem:[%s22] sm:$0x1]
    %v1446 = vperm.slane %v1444, 0
    %v1448 = vadd.f32 %v1443, %v1446
    %vm1449 = vcmask 254976
    %1450 = vst.msk [vmem:[#allocation17] sm:$0x3] %vm1449, %v1448
    // Predicated region
    $region130: #{style_encoder_forward.1} parent=1 // pred_check
      _
    $region131: #{style_encoder_forward.1} parent=1 // pred_check_branch
      %1452 = sbr.rel (0) target = $region133
    $region132: #{style_encoder_forward.1} parent=1 // pred_region
      %1454 = vsyncadd [#allocation4], 0
      %s1456 = sshll.u32 [#allocation17], 4
      %s1457 = int_to_ptr.vmem [resolvable:$true] %s1456
      %s1458 = sshll.u32 %s23, 4
      %s1459 = int_to_ptr.hbm [resolvable:$true] %s1458
      %1461 = dma.vmem_to_hbm [thread:$0]  %s1457, 32, %s1459, [#allocation4]
    $region133: #{style_encoder_forward.1} parent=1 // pred_fallthru
      _
    // Predicated region
    $region134: #{style_encoder_forward.1} parent=1 // pred_check
      _
    $region135: #{style_encoder_forward.1} parent=1 // pred_check_branch
      %1463 = sbr.rel (0) target = $region137
    $region136: #{style_encoder_forward.1} parent=1 // pred_region
      %1465 = dma.done [#allocation4], 32
    $region137: #{style_encoder_forward.1} parent=1 // pred_fallthru
      _
    %1466 = vsyncpa [#allocation3], 1
    %1467 = vsyncpa [#allocation6], 1
    %1468 = vsyncpa [#allocation9], 1
    %1469 = vsyncpa [#allocation12], 1
    %1470 = vsyncpa [#allocation15], 1
    %1471 = vsyncpa [#allocation4], 1

</llo_original>
